<compile_context>
chip_gen: v7x
topology: tpu7x:2x2x1
jax: 0.10.0
libtpu: 0.0.40
codegen_flags: <defaults>
</compile_context>

<pallas_src>
import jax
import jax.numpy as jnp
from jax.experimental import pallas as pl
from jax.experimental.pallas import tpu as pltpu

IN_FEATURES = 28 * 28          # 784
HIDDEN = 512
OUT_FEATURES = 10
PADDED_OUT = 128               # pad 10 -> 128 lanes for lane-dense output stores


def mlp_kernel(x_ref, w1_ref, b1_ref, w2_ref, b2_ref, w3_ref, b3_ref, o_ref):
    # Layer 1: (TM, 784) @ (784, 512) + b1, ReLU   (f32 accumulation on the MXU)
    h1 = jnp.dot(x_ref[...], w1_ref[...], preferred_element_type=jnp.float32)
    h1 = jnp.maximum(h1 + b1_ref[...], 0.0)
    # Layer 2: (TM, 512) @ (512, 512) + b2, ReLU
    h2 = jnp.dot(h1.astype(w2_ref.dtype), w2_ref[...],
                 preferred_element_type=jnp.float32)
    h2 = jnp.maximum(h2 + b2_ref[...], 0.0)
    # Layer 3: (TM, 512) @ (512, 128-padded) + b3, ReLU
    # (the reference module applies ReLU after the last Linear as well)
    h3 = jnp.dot(h2.astype(w3_ref.dtype), w3_ref[...],
                 preferred_element_type=jnp.float32)
    o_ref[...] = jnp.maximum(h3 + b3_ref[...], 0.0).astype(o_ref.dtype)


def _round_up(n, m):
    return (n + m - 1) // m * m


def neural_network_forward(x, params, *, use_bf16=False, tm=512):
    """x: (B, 28, 28) float32. Returns (B, 10) float32."""
    w1, b1, w2, b2, w3, b3 = params
    B = x.shape[0]
    x_flat = x.reshape(B, IN_FEATURES).astype(jnp.float32)   # nn.Flatten()

    # Zero-pad the head 10 -> 128 output features (sliced off in the wrapper).
    w3p = jnp.zeros((HIDDEN, PADDED_OUT), jnp.float32).at[:, :OUT_FEATURES].set(w3)
    b3p = jnp.zeros((1, PADDED_OUT), jnp.float32).at[:, :OUT_FEATURES].set(b3)

    # Batch tiling: TM multiple of 8 sublanes, pad B so there is no edge tile.
    TM = min(tm, _round_up(B, 8))
    B_pad = _round_up(B, TM)
    if B_pad != B:
        x_flat = jnp.pad(x_flat, ((0, B_pad - B), (0, 0)))

    compute_dtype = jnp.bfloat16 if use_bf16 else jnp.float32
    x_in = x_flat.astype(compute_dtype)
    w1c = w1.astype(compute_dtype)
    w2c = w2.astype(compute_dtype)
    w3c = w3p.astype(compute_dtype)

    grid = (B_pad // TM,)

    flops = 2 * B_pad * (IN_FEATURES * HIDDEN + HIDDEN * HIDDEN + HIDDEN * PADDED_OUT)
    bytes_accessed = (
        x_in.size * x_in.dtype.itemsize
        + sum(a.size * a.dtype.itemsize for a in (w1c, w2c, w3c, b1, b2, b3p))
        + B_pad * PADDED_OUT * 4
    )

    out = pl.pallas_call(
        mlp_kernel,
        out_shape=jax.ShapeDtypeStruct((B_pad, PADDED_OUT), jnp.float32),
        grid_spec=pl.GridSpec(
            grid=grid,
            in_specs=[
                # x: tiled over the batch grid axis
                pl.BlockSpec((TM, IN_FEATURES), lambda i: (i, 0)),
                # weights / biases: constant block index -> resident in VMEM
                pl.BlockSpec((IN_FEATURES, HIDDEN), lambda i: (0, 0)),
                pl.BlockSpec((1, HIDDEN), lambda i: (0, 0)),
                pl.BlockSpec((HIDDEN, HIDDEN), lambda i: (0, 0)),
                pl.BlockSpec((1, HIDDEN), lambda i: (0, 0)),
                pl.BlockSpec((HIDDEN, PADDED_OUT), lambda i: (0, 0)),
                pl.BlockSpec((1, PADDED_OUT), lambda i: (0, 0)),
            ],
            out_specs=pl.BlockSpec((TM, PADDED_OUT), lambda i: (i, 0)),
        ),
        compiler_params=pltpu.CompilerParams(
            dimension_semantics=("parallel",),
        ),
        cost_estimate=pl.CostEstimate(
            flops=flops, transcendentals=0, bytes_accessed=bytes_accessed),
    )(x_in, w1c, b1, w2c, b2, w3c, b3p)

    return out[:B, :OUT_FEATURES]


def init_params(key):
    """Deterministic init mimicking PyTorch nn.Linear default (U[-1/sqrt(fan_in), +])."""
    def linear(k, fan_in, fan_out):
        kw, kb = jax.random.split(k)
        bound = 1.0 / (fan_in ** 0.5)
        w = jax.random.uniform(kw, (fan_in, fan_out), jnp.float32, -bound, bound)
        b = jax.random.uniform(kb, (1, fan_out), jnp.float32, -bound, bound)
        return w, b

    k1, k2, k3 = jax.random.split(key, 3)
    w1, b1 = linear(k1, IN_FEATURES, HIDDEN)
    w2, b2 = linear(k2, HIDDEN, HIDDEN)
    w3, b3 = linear(k3, HIDDEN, OUT_FEATURES)
    return (w1, b1, w2, b2, w3, b3)


def _reference(x, params):
    w1, b1, w2, b2, w3, b3 = params
    xf = x.reshape(x.shape[0], -1)
    h = jnp.maximum(xf @ w1 + b1, 0.0)
    h = jnp.maximum(h @ w2 + b2, 0.0)
    return jnp.maximum(h @ w3 + b3, 0.0)


if __name__ == "__main__":
    key = jax.random.PRNGKey(0)
    pkey, xkey = jax.random.split(key)
    params = init_params(pkey)

    # Small batch of MNIST-shaped inputs: (B, 28, 28)
    x = jax.random.normal(xkey, (2, 28, 28), dtype=jnp.float32)

    ref = _reference(x, params)

    # Full-precision path: must match the f32 reference tightly.
    logits_f32 = neural_network_forward(x, params, use_bf16=False)
    jax.block_until_ready(logits_f32)
    assert logits_f32.shape == (2, OUT_FEATURES)
    assert jnp.allclose(logits_f32, ref, atol=1e-4, rtol=1e-4)

    # bf16-weight path (halves weight-DMA bytes): loose numerical check.
    logits_bf16 = neural_network_forward(x, params, use_bf16=True)
    jax.block_until_ready(logits_bf16)
    assert logits_bf16.shape == (2, OUT_FEATURES)
    assert jnp.allclose(logits_bf16, ref, atol=5e-2, rtol=5e-2)

    print("KERNEL_OK")
</pallas_src>

<mosaic_0001>
module attributes {stable_mosaic.version = 11 : i64} {
  func.func @mlp_kernel(%arg0: i32, %arg1: memref<8x784xf32, #tpu.memory_space<vmem>>, %arg2: memref<784x512xf32, #tpu.memory_space<vmem>>, %arg3: memref<1x512xf32, #tpu.memory_space<vmem>>, %arg4: memref<512x512xf32, #tpu.memory_space<vmem>>, %arg5: memref<1x512xf32, #tpu.memory_space<vmem>>, %arg6: memref<512x128xf32, #tpu.memory_space<vmem>>, %arg7: memref<1x128xf32, #tpu.memory_space<vmem>>, %arg8: memref<8x128xf32, #tpu.memory_space<vmem>>) attributes {dimension_semantics = [#tpu.dimension_semantics<parallel>], iteration_bounds = array<i64: 1>, scalar_prefetch = 0 : i64, scratch_operands = 0 : i64, tpu.core_type = #tpu.core_type<tc>, window_params = [{transform_indices = @transform_0, window_bounds = array<i64: 8, 784>}, {pipeline_mode = #tpu.pipeline_mode<synchronous>, transform_indices = @transform_1, window_bounds = array<i64: 784, 512>}, {pipeline_mode = #tpu.pipeline_mode<synchronous>, transform_indices = @transform_2, window_bounds = array<i64: 1, 512>}, {pipeline_mode = #tpu.pipeline_mode<synchronous>, transform_indices = @transform_3, window_bounds = array<i64: 512, 512>}, {pipeline_mode = #tpu.pipeline_mode<synchronous>, transform_indices = @transform_4, window_bounds = array<i64: 1, 512>}, {pipeline_mode = #tpu.pipeline_mode<synchronous>, transform_indices = @transform_5, window_bounds = array<i64: 512, 128>}, {pipeline_mode = #tpu.pipeline_mode<synchronous>, transform_indices = @transform_6, window_bounds = array<i64: 1, 128>}, {transform_indices = @transform_7, window_bounds = array<i64: 8, 128>}]} {
    %c0 = arith.constant 0 : index
    %c0_0 = arith.constant 0 : index
    %0 = vector.load %arg1[%c0, %c0_0] : memref<8x784xf32, #tpu.memory_space<vmem>>, vector<8x784xf32>
    %c0_1 = arith.constant 0 : index
    %c0_2 = arith.constant 0 : index
    %1 = vector.load %arg2[%c0_1, %c0_2] : memref<784x512xf32, #tpu.memory_space<vmem>>, vector<784x512xf32>
    %cst = arith.constant dense<0.000000e+00> : vector<8x512xf32>
    %2 = tpu.matmul %0, %1, %cst {dimension_numbers = #tpu.dot_dimension_numbers<[1], [0], [0], [1], [0, 0, 1, 1], [], []>} : vector<8x784xf32>, vector<784x512xf32>, vector<8x512xf32> -> vector<8x512xf32>
    %c0_3 = arith.constant 0 : index
    %c0_4 = arith.constant 0 : index
    %3 = vector.load %arg3[%c0_3, %c0_4] : memref<1x512xf32, #tpu.memory_space<vmem>>, vector<1x512xf32>
    %4 = vector.broadcast %3 : vector<1x512xf32> to vector<8x512xf32>
    %5 = arith.addf %2, %4 : vector<8x512xf32>
    %cst_5 = arith.constant 0.000000e+00 : f32
    %6 = vector.broadcast %cst_5 : f32 to vector<8x512xf32>
    %7 = arith.maximumf %5, %6 : vector<8x512xf32>
    %c0_6 = arith.constant 0 : index
    %c0_7 = arith.constant 0 : index
    %8 = vector.load %arg4[%c0_6, %c0_7] : memref<512x512xf32, #tpu.memory_space<vmem>>, vector<512x512xf32>
    %cst_8 = arith.constant dense<0.000000e+00> : vector<8x512xf32>
    %9 = tpu.matmul %7, %8, %cst_8 {dimension_numbers = #tpu.dot_dimension_numbers<[1], [0], [0], [1], [0, 0, 1, 1], [], []>} : vector<8x512xf32>, vector<512x512xf32>, vector<8x512xf32> -> vector<8x512xf32>
    %c0_9 = arith.constant 0 : index
    %c0_10 = arith.constant 0 : index
    %10 = vector.load %arg5[%c0_9, %c0_10] : memref<1x512xf32, #tpu.memory_space<vmem>>, vector<1x512xf32>
    %11 = vector.broadcast %10 : vector<1x512xf32> to vector<8x512xf32>
    %12 = arith.addf %9, %11 : vector<8x512xf32>
    %cst_11 = arith.constant 0.000000e+00 : f32
    %13 = vector.broadcast %cst_11 : f32 to vector<8x512xf32>
    %14 = arith.maximumf %12, %13 : vector<8x512xf32>
    %c0_12 = arith.constant 0 : index
    %c0_13 = arith.constant 0 : index
    %15 = vector.load %arg6[%c0_12, %c0_13] : memref<512x128xf32, #tpu.memory_space<vmem>>, vector<512x128xf32>
    %cst_14 = arith.constant dense<0.000000e+00> : vector<8x128xf32>
    %16 = tpu.matmul %14, %15, %cst_14 {dimension_numbers = #tpu.dot_dimension_numbers<[1], [0], [0], [1], [0, 0, 1, 1], [], []>} : vector<8x512xf32>, vector<512x128xf32>, vector<8x128xf32> -> vector<8x128xf32>
    %c0_15 = arith.constant 0 : index
    %c0_16 = arith.constant 0 : index
    %17 = vector.load %arg7[%c0_15, %c0_16] : memref<1x128xf32, #tpu.memory_space<vmem>>, vector<1x128xf32>
    %18 = vector.broadcast %17 : vector<1x128xf32> to vector<8x128xf32>
    %19 = arith.addf %16, %18 : vector<8x128xf32>
    %cst_17 = arith.constant 0.000000e+00 : f32
    %20 = vector.broadcast %cst_17 : f32 to vector<8x128xf32>
    %21 = arith.maximumf %19, %20 : vector<8x128xf32>
    %c0_18 = arith.constant 0 : index
    %c0_19 = arith.constant 0 : index
    %22 = vector.load %arg8[%c0_18, %c0_19] : memref<8x128xf32, #tpu.memory_space<vmem>>, vector<8x128xf32>
    tpu.vector_store %arg8[%c0_18, %c0_19], %21 {strides = array<i32>} : memref<8x128xf32, #tpu.memory_space<vmem>>, vector<8x128xf32>,
    return
  }
  func.func @transform_0(%arg0: i32) -> (i32, i32) {
    %c0_i32 = arith.constant 0 : i32
    %c0_i32_0 = arith.constant 0 : i32
    return %arg0, %c0_i32 : i32, i32
  }
  func.func @transform_1(%arg0: i32) -> (i32, i32) {
    %c0_i32 = arith.constant 0 : i32
    %c0_i32_0 = arith.constant 0 : i32
    %c0_i32_1 = arith.constant 0 : i32
    return %c0_i32, %c0_i32_0 : i32, i32
  }
  func.func @transform_2(%arg0: i32) -> (i32, i32) {
    %c0_i32 = arith.constant 0 : i32
    %c0_i32_0 = arith.constant 0 : i32
    %c0_i32_1 = arith.constant 0 : i32
    return %c0_i32, %c0_i32_0 : i32, i32
  }
  func.func @transform_3(%arg0: i32) -> (i32, i32) {
    %c0_i32 = arith.constant 0 : i32
    %c0_i32_0 = arith.constant 0 : i32
    %c0_i32_1 = arith.constant 0 : i32
    return %c0_i32, %c0_i32_0 : i32, i32
  }
  func.func @transform_4(%arg0: i32) -> (i32, i32) {
    %c0_i32 = arith.constant 0 : i32
    %c0_i32_0 = arith.constant 0 : i32
    %c0_i32_1 = arith.constant 0 : i32
    return %c0_i32, %c0_i32_0 : i32, i32
  }
  func.func @transform_5(%arg0: i32) -> (i32, i32) {
    %c0_i32 = arith.constant 0 : i32
    %c0_i32_0 = arith.constant 0 : i32
    %c0_i32_1 = arith.constant 0 : i32
    return %c0_i32, %c0_i32_0 : i32, i32
  }
  func.func @transform_6(%arg0: i32) -> (i32, i32) {
    %c0_i32 = arith.constant 0 : i32
    %c0_i32_0 = arith.constant 0 : i32
    %c0_i32_1 = arith.constant 0 : i32
    return %c0_i32, %c0_i32_0 : i32, i32
  }
  func.func @transform_7(%arg0: i32) -> (i32, i32) {
    %c0_i32 = arith.constant 0 : i32
    %c0_i32_0 = arith.constant 0 : i32
    return %arg0, %c0_i32 : i32, i32
  }
}

</mosaic_0001>

<llo_original>
// kernel: tpu_custom_call.1
$region0: #{tpu_custom_call.1}
  #allocation0 [shape = 'u32[]', space=smem, size = 0x4, offset = 0x4, fixed_abs, tag = 'smem constant byte address 0x4 - core index']
  #allocation1 [shape = 'u32[144,128]{1,0:T(1,128)}', space=vmem, size = 0x12000, scoped, tag = 'internal scratch']
  %s0 = inlined_call_operand.hbm [shape: f32[8,784], index: 0, kind: input, shape index: {}]
  %s1 = inlined_call_operand.hbm [shape: f32[784,512], index: 1, kind: input, shape index: {}]
  %s2 = inlined_call_operand.hbm [shape: f32[1,512], index: 2, kind: input, shape index: {}]
  %s3 = inlined_call_operand.hbm [shape: f32[512,512], index: 3, kind: input, shape index: {}]
  %s4 = inlined_call_operand.hbm [shape: f32[1,512], index: 4, kind: input, shape index: {}]
  %s5 = inlined_call_operand.hbm [shape: f32[512,128], index: 5, kind: input, shape index: {}]
  %s6 = inlined_call_operand.hbm [shape: f32[1,128], index: 6, kind: input, shape index: {}]
  %s7 = inlined_call_operand.hbm [shape: f32[8,128], index: 7, kind: output, shape index: {}]
  %s8 = sld [smem:[#allocation0]]
  $region66: #{tpu_custom_call.1} parent=0
    _
  %s10 = ssub.s32 1, %s8
  %s11 = scalar_select 0, %s10, %s8
  $region1: #{tpu_custom_call.1} parent=0
    #allocation2 [shape = 'u8[28672]{0}', space=vmem, size = 0x7000, scoped, tag = 'input window, operand 0, single buffered']
    #allocation3 [shape = 's32[1]{0}', space=sflag, size = 0x4, scoped, tag = 'scoped memory for tpu_custom_call.1']
    #allocation4 [shape = 's32[1]{0}', space=sflag, size = 0x4, scoped, tag = 'scoped memory for tpu_custom_call.1']
    #allocation5 [shape = 'u8[1605632]{0}', space=vmem, size = 0x188000, scoped, tag = 'input window, operand 1, single buffered']
    #allocation6 [shape = 's32[1]{0}', space=sflag, size = 0x4, scoped, tag = 'scoped memory for tpu_custom_call.1']
    #allocation7 [shape = 'u8[2048]{0}', space=vmem, size = 0x800, scoped, tag = 'input window, operand 2, single buffered']
    #allocation8 [shape = 'u8[1048576]{0}', space=vmem, size = 0x100000, scoped, tag = 'input window, operand 3, single buffered']
    #allocation9 [shape = 's32[1]{0}', space=sflag, size = 0x4, scoped, tag = 'scoped memory for tpu_custom_call.1']
    #allocation10 [shape = 'u8[2048]{0}', space=vmem, size = 0x800, scoped, tag = 'input window, operand 4, single buffered']
    #allocation11 [shape = 'u8[262144]{0}', space=vmem, size = 0x40000, scoped, tag = 'input window, operand 5, single buffered']
    #allocation12 [shape = 's32[1]{0}', space=sflag, size = 0x4, scoped, tag = 'scoped memory for tpu_custom_call.1']
    #allocation13 [shape = 'u8[512]{0}', space=vmem, size = 0x400, scoped, tag = 'input window, operand 6, single buffered']
    #allocation14 [shape = 'u8[4096]{0}', space=vmem, size = 0x1000, scoped, tag = 'output window, operand 0, single buffered']
    %12 = vsyncpa [#allocation3], 0
    %13 = vsyncpa [#allocation6], 0
    %14 = vsyncpa [#allocation9], 0
    %15 = vsyncpa [#allocation12], 0
    %16 = vsyncpa [#allocation4], 0
    // Predicated region
    $region2: #{tpu_custom_call.1} parent=1 // pred_check
      _
    $region3: #{tpu_custom_call.1} parent=1 // pred_check_branch
      %18 = sbr.rel (0) target = $region5
    $region4: #{tpu_custom_call.1} parent=1 // pred_region
      %s20 = ssub.s32 896, 896
      %21 = vsyncadd [#allocation3], %s20
      %s23 = sshll.u32 [#allocation2], 4
      %s24 = int_to_ptr.vmem [resolvable:$true] %s23
      %26 = dma.hbm_to_vmem [thread:$0]  %s0, 896, %s24, [#allocation3]
    $region5: #{tpu_custom_call.1} parent=1 // pred_fallthru
      _
    // Predicated region
    $region6: #{tpu_custom_call.1} parent=1 // pred_check
      _
    $region7: #{tpu_custom_call.1} parent=1 // pred_check_branch
      %28 = sbr.rel (0) target = $region9
    $region8: #{tpu_custom_call.1} parent=1 // pred_region
      %s30 = ssub.s32 50176, 50176
      %31 = vsyncadd [#allocation6], %s30
      %s32 = sshll.u32 [#allocation5], 4
      %s33 = int_to_ptr.vmem [resolvable:$true] %s32
      %38 = dma.hbm_to_vmem [thread:$0]  %s1, 50176, %s33, [#allocation6], 512, 512, 32
    $region9: #{tpu_custom_call.1} parent=1 // pred_fallthru
      _
    // Predicated region
    $region10: #{tpu_custom_call.1} parent=1 // pred_check
      _
    $region11: #{tpu_custom_call.1} parent=1 // pred_check_branch
      %40 = sbr.rel (0) target = $region13
    $region12: #{tpu_custom_call.1} parent=1 // pred_region
      %s42 = ssub.s32 64, 64
      %43 = vsyncadd [#allocation6], %s42
      %s45 = sshll.u32 [#allocation7], 4
      %s46 = int_to_ptr.vmem [resolvable:$true] %s45
      %48 = dma.hbm_to_vmem [thread:$0]  %s2, 64, %s46, [#allocation6]
    $region13: #{tpu_custom_call.1} parent=1 // pred_fallthru
      _
    // Predicated region
    $region14: #{tpu_custom_call.1} parent=1 // pred_check
      _
    $region15: #{tpu_custom_call.1} parent=1 // pred_check_branch
      %50 = sbr.rel (0) target = $region17
    $region16: #{tpu_custom_call.1} parent=1 // pred_region
      %s52 = ssub.s32 32768, 32768
      %53 = vsyncadd [#allocation9], %s52
      %s54 = sshll.u32 [#allocation8], 4
      %s55 = int_to_ptr.vmem [resolvable:$true] %s54
      %60 = dma.hbm_to_vmem [thread:$0]  %s3, 32768, %s55, [#allocation9], 512, 512, 32
    $region17: #{tpu_custom_call.1} parent=1 // pred_fallthru
      _
    // Predicated region
    $region18: #{tpu_custom_call.1} parent=1 // pred_check
      _
    $region19: #{tpu_custom_call.1} parent=1 // pred_check_branch
      %62 = sbr.rel (0) target = $region21
    $region20: #{tpu_custom_call.1} parent=1 // pred_region
      %s64 = ssub.s32 64, 64
      %65 = vsyncadd [#allocation9], %s64
      %s67 = sshll.u32 [#allocation10], 4
      %s68 = int_to_ptr.vmem [resolvable:$true] %s67
      %70 = dma.hbm_to_vmem [thread:$0]  %s4, 64, %s68, [#allocation9]
    $region21: #{tpu_custom_call.1} parent=1 // pred_fallthru
      _
    // Predicated region
    $region22: #{tpu_custom_call.1} parent=1 // pred_check
      _
    $region23: #{tpu_custom_call.1} parent=1 // pred_check_branch
      %72 = sbr.rel (0) target = $region25
    $region24: #{tpu_custom_call.1} parent=1 // pred_region
      %s74 = ssub.s32 8192, 8192
      %75 = vsyncadd [#allocation12], %s74
      %s76 = sshll.u32 [#allocation11], 4
      %s77 = int_to_ptr.vmem [resolvable:$true] %s76
      %82 = dma.hbm_to_vmem [thread:$0]  %s5, 8192, %s77, [#allocation12], 128, 128, 8
    $region25: #{tpu_custom_call.1} parent=1 // pred_fallthru
      _
    // Predicated region
    $region26: #{tpu_custom_call.1} parent=1 // pred_check
      _
    $region27: #{tpu_custom_call.1} parent=1 // pred_check_branch
      %84 = sbr.rel (0) target = $region29
    $region28: #{tpu_custom_call.1} parent=1 // pred_region
      %s86 = ssub.s32 16, 16
      %87 = vsyncadd [#allocation12], %s86
      %s89 = sshll.u32 [#allocation13], 4
      %s90 = int_to_ptr.vmem [resolvable:$true] %s89
      %92 = dma.hbm_to_vmem [thread:$0]  %s6, 16, %s90, [#allocation12]
    $region29: #{tpu_custom_call.1} parent=1 // pred_fallthru
      _
    // Predicated region
    $region30: #{tpu_custom_call.1} parent=1 // pred_check
      _
    $region31: #{tpu_custom_call.1} parent=1 // pred_check_branch
      %94 = sbr.rel (0) target = $region33
    $region32: #{tpu_custom_call.1} parent=1 // pred_region
      %95 = dma.done [#allocation3], 896
    $region33: #{tpu_custom_call.1} parent=1 // pred_fallthru
      _
    // Predicated region
    $region34: #{tpu_custom_call.1} parent=1 // pred_check
      _
    $region35: #{tpu_custom_call.1} parent=1 // pred_check_branch
      %97 = sbr.rel (0) target = $region37
    $region36: #{tpu_custom_call.1} parent=1 // pred_region
      %98 = dma.done [#allocation6], 50176
    $region37: #{tpu_custom_call.1} parent=1 // pred_fallthru
      _
    // Predicated region
    $region38: #{tpu_custom_call.1} parent=1 // pred_check
      _
    $region39: #{tpu_custom_call.1} parent=1 // pred_check_branch
      %100 = sbr.rel (0) target = $region41
    $region40: #{tpu_custom_call.1} parent=1 // pred_region
      %101 = dma.done [#allocation6], 64
    $region41: #{tpu_custom_call.1} parent=1 // pred_fallthru
      _
    // Predicated region
    $region42: #{tpu_custom_call.1} parent=1 // pred_check
      _
    $region43: #{tpu_custom_call.1} parent=1 // pred_check_branch
      %103 = sbr.rel (0) target = $region45
    $region44: #{tpu_custom_call.1} parent=1 // pred_region
      %104 = dma.done [#allocation9], 32768
    $region45: #{tpu_custom_call.1} parent=1 // pred_fallthru
      _
    // Predicated region
    $region46: #{tpu_custom_call.1} parent=1 // pred_check
      _
    $region47: #{tpu_custom_call.1} parent=1 // pred_check_branch
      %106 = sbr.rel (0) target = $region49
    $region48: #{tpu_custom_call.1} parent=1 // pred_region
      %107 = dma.done [#allocation9], 64
    $region49: #{tpu_custom_call.1} parent=1 // pred_fallthru
      _
    // Predicated region
    $region50: #{tpu_custom_call.1} parent=1 // pred_check
      _
    $region51: #{tpu_custom_call.1} parent=1 // pred_check_branch
      %109 = sbr.rel (0) target = $region53
    $region52: #{tpu_custom_call.1} parent=1 // pred_region
      %110 = dma.done [#allocation12], 8192
    $region53: #{tpu_custom_call.1} parent=1 // pred_fallthru
      _
    // Predicated region
    $region54: #{tpu_custom_call.1} parent=1 // pred_check
      _
    $region55: #{tpu_custom_call.1} parent=1 // pred_check_branch
      %112 = sbr.rel (0) target = $region57
    $region56: #{tpu_custom_call.1} parent=1 // pred_region
      %113 = dma.done [#allocation12], 16
    $region57: #{tpu_custom_call.1} parent=1 // pred_fallthru
      _
    %v114 = vld [vmem:[#allocation2] sm:$0xff]
    %v115 = vld [vmem:[#allocation2 + $0x8] sm:$0xff]
    %v116 = vld [vmem:[#allocation2 + $0x10] sm:$0xff]
    %v117 = vld [vmem:[#allocation2 + $0x18] sm:$0xff]
    %v118 = vld [vmem:[#allocation2 + $0x20] sm:$0xff]
    %v119 = vld [vmem:[#allocation2 + $0x28] sm:$0xff]
    %v120 = vld [vmem:[#allocation2 + $0x30] sm:$0xff]
    %v121 = vld [vmem:[#allocation5] sm:$0xff]
    %v122 = vld [vmem:[#allocation5 + $0x8] sm:$0xff]
    %v123 = vld [vmem:[#allocation5 + $0x10] sm:$0xff]
    %v124 = vld [vmem:[#allocation5 + $0x18] sm:$0xff]
    %v125 = vld [vmem:[#allocation5 + $0x20] sm:$0xff]
    %v126 = vld [vmem:[#allocation5 + $0x28] sm:$0xff]
    %v127 = vld [vmem:[#allocation5 + $0x30] sm:$0xff]
    %v128 = vld [vmem:[#allocation5 + $0x38] sm:$0xff]
    %v129 = vld [vmem:[#allocation5 + $0x40] sm:$0xff]
    %v130 = vld [vmem:[#allocation5 + $0x48] sm:$0xff]
    %v131 = vld [vmem:[#allocation5 + $0x50] sm:$0xff]
    %v132 = vld [vmem:[#allocation5 + $0x58] sm:$0xff]
    %v133 = vld [vmem:[#allocation5 + $0x60] sm:$0xff]
    %v134 = vld [vmem:[#allocation5 + $0x68] sm:$0xff]
    %v135 = vld [vmem:[#allocation5 + $0x70] sm:$0xff]
    %v136 = vld [vmem:[#allocation5 + $0x78] sm:$0xff]
    %v137 = vld [vmem:[#allocation5 + $0x80] sm:$0xff]
    %v138 = vld [vmem:[#allocation5 + $0x88] sm:$0xff]
    %v139 = vld [vmem:[#allocation5 + $0x90] sm:$0xff]
    %v140 = vld [vmem:[#allocation5 + $0x98] sm:$0xff]
    %v141 = vld [vmem:[#allocation5 + $0xa0] sm:$0xff]
    %v142 = vld [vmem:[#allocation5 + $0xa8] sm:$0xff]
    %v143 = vld [vmem:[#allocation5 + $0xb0] sm:$0xff]
    %v144 = vld [vmem:[#allocation5 + $0xb8] sm:$0xff]
    %v145 = vld [vmem:[#allocation5 + $0xc0] sm:$0xff]
    %v146 = vld [vmem:[#allocation5 + $0xc8] sm:$0xff]
    %v147 = vld [vmem:[#allocation5 + $0xd0] sm:$0xff]
    %v148 = vld [vmem:[#allocation5 + $0xd8] sm:$0xff]
    %v149 = vld [vmem:[#allocation5 + $0xe0] sm:$0xff]
    %v150 = vld [vmem:[#allocation5 + $0xe8] sm:$0xff]
    %v151 = vld [vmem:[#allocation5 + $0xf0] sm:$0xff]
    %v152 = vld [vmem:[#allocation5 + $0xf8] sm:$0xff]
    %v153 = vld [vmem:[#allocation5 + $0x100] sm:$0xff]
    %v154 = vld [vmem:[#allocation5 + $0x108] sm:$0xff]
    %v155 = vld [vmem:[#allocation5 + $0x110] sm:$0xff]
    %v156 = vld [vmem:[#allocation5 + $0x118] sm:$0xff]
    %v157 = vld [vmem:[#allocation5 + $0x120] sm:$0xff]
    %v158 = vld [vmem:[#allocation5 + $0x128] sm:$0xff]
    %v159 = vld [vmem:[#allocation5 + $0x130] sm:$0xff]
    %v160 = vld [vmem:[#allocation5 + $0x138] sm:$0xff]
    %v161 = vld [vmem:[#allocation5 + $0x140] sm:$0xff]
    %v162 = vld [vmem:[#allocation5 + $0x148] sm:$0xff]
    %v163 = vld [vmem:[#allocation5 + $0x150] sm:$0xff]
    %v164 = vld [vmem:[#allocation5 + $0x158] sm:$0xff]
    %v165 = vld [vmem:[#allocation5 + $0x160] sm:$0xff]
    %v166 = vld [vmem:[#allocation5 + $0x168] sm:$0xff]
    %v167 = vld [vmem:[#allocation5 + $0x170] sm:$0xff]
    %v168 = vld [vmem:[#allocation5 + $0x178] sm:$0xff]
    %v169 = vld [vmem:[#allocation5 + $0x180] sm:$0xff]
    %v170 = vld [vmem:[#allocation5 + $0x188] sm:$0xff]
    %v171 = vld [vmem:[#allocation5 + $0x190] sm:$0xff]
    %v172 = vld [vmem:[#allocation5 + $0x198] sm:$0xff]
    %v173 = vld [vmem:[#allocation5 + $0x1a0] sm:$0xff]
    %v174 = vld [vmem:[#allocation5 + $0x1a8] sm:$0xff]
    %v175 = vld [vmem:[#allocation5 + $0x1b0] sm:$0xff]
    %v176 = vld [vmem:[#allocation5 + $0x1b8] sm:$0xff]
    %v177 = vld [vmem:[#allocation5 + $0x1c0] sm:$0xff]
    %v178 = vld [vmem:[#allocation5 + $0x1c8] sm:$0xff]
    %v179 = vld [vmem:[#allocation5 + $0x1d0] sm:$0xff]
    %v180 = vld [vmem:[#allocation5 + $0x1d8] sm:$0xff]
    %v181 = vld [vmem:[#allocation5 + $0x1e0] sm:$0xff]
    %v182 = vld [vmem:[#allocation5 + $0x1e8] sm:$0xff]
    %v183 = vld [vmem:[#allocation5 + $0x1f0] sm:$0xff]
    %v184 = vld [vmem:[#allocation5 + $0x1f8] sm:$0xff]
    %v185 = vld [vmem:[#allocation5 + $0x200] sm:$0xff]
    %v186 = vld [vmem:[#allocation5 + $0x208] sm:$0xff]
    %v187 = vld [vmem:[#allocation5 + $0x210] sm:$0xff]
    %v188 = vld [vmem:[#allocation5 + $0x218] sm:$0xff]
    %v189 = vld [vmem:[#allocation5 + $0x220] sm:$0xff]
    %v190 = vld [vmem:[#allocation5 + $0x228] sm:$0xff]
    %v191 = vld [vmem:[#allocation5 + $0x230] sm:$0xff]
    %v192 = vld [vmem:[#allocation5 + $0x238] sm:$0xff]
    %v193 = vld [vmem:[#allocation5 + $0x240] sm:$0xff]
    %v194 = vld [vmem:[#allocation5 + $0x248] sm:$0xff]
    %v195 = vld [vmem:[#allocation5 + $0x250] sm:$0xff]
    %v196 = vld [vmem:[#allocation5 + $0x258] sm:$0xff]
    %v197 = vld [vmem:[#allocation5 + $0x260] sm:$0xff]
    %v198 = vld [vmem:[#allocation5 + $0x268] sm:$0xff]
    %v199 = vld [vmem:[#allocation5 + $0x270] sm:$0xff]
    %v200 = vld [vmem:[#allocation5 + $0x278] sm:$0xff]
    %v201 = vld [vmem:[#allocation5 + $0x280] sm:$0xff]
    %v202 = vld [vmem:[#allocation5 + $0x288] sm:$0xff]
    %v203 = vld [vmem:[#allocation5 + $0x290] sm:$0xff]
    %v204 = vld [vmem:[#allocation5 + $0x298] sm:$0xff]
    %v205 = vld [vmem:[#allocation5 + $0x2a0] sm:$0xff]
    %v206 = vld [vmem:[#allocation5 + $0x2a8] sm:$0xff]
    %v207 = vld [vmem:[#allocation5 + $0x2b0] sm:$0xff]
    %v208 = vld [vmem:[#allocation5 + $0x2b8] sm:$0xff]
    %v209 = vld [vmem:[#allocation5 + $0x2c0] sm:$0xff]
    %v210 = vld [vmem:[#allocation5 + $0x2c8] sm:$0xff]
    %v211 = vld [vmem:[#allocation5 + $0x2d0] sm:$0xff]
    %v212 = vld [vmem:[#allocation5 + $0x2d8] sm:$0xff]
    %v213 = vld [vmem:[#allocation5 + $0x2e0] sm:$0xff]
    %v214 = vld [vmem:[#allocation5 + $0x2e8] sm:$0xff]
    %v215 = vld [vmem:[#allocation5 + $0x2f0] sm:$0xff]
    %v216 = vld [vmem:[#allocation5 + $0x2f8] sm:$0xff]
    %v217 = vld [vmem:[#allocation5 + $0x300] sm:$0xff]
    %v218 = vld [vmem:[#allocation5 + $0x308] sm:$0xff]
    %v219 = vld [vmem:[#allocation5 + $0x310] sm:$0xff]
    %v220 = vld [vmem:[#allocation5 + $0x318] sm:$0xff]
    %v221 = vld [vmem:[#allocation5 + $0x320] sm:$0xff]
    %v222 = vld [vmem:[#allocation5 + $0x328] sm:$0xff]
    %v223 = vld [vmem:[#allocation5 + $0x330] sm:$0xff]
    %v224 = vld [vmem:[#allocation5 + $0x338] sm:$0xff]
    %v225 = vld [vmem:[#allocation5 + $0x340] sm:$0xff]
    %v226 = vld [vmem:[#allocation5 + $0x348] sm:$0xff]
    %v227 = vld [vmem:[#allocation5 + $0x350] sm:$0xff]
    %v228 = vld [vmem:[#allocation5 + $0x358] sm:$0xff]
    %v229 = vld [vmem:[#allocation5 + $0x360] sm:$0xff]
    %v230 = vld [vmem:[#allocation5 + $0x368] sm:$0xff]
    %v231 = vld [vmem:[#allocation5 + $0x370] sm:$0xff]
    %v232 = vld [vmem:[#allocation5 + $0x378] sm:$0xff]
    %v233 = vld [vmem:[#allocation5 + $0x380] sm:$0xff]
    %v234 = vld [vmem:[#allocation5 + $0x388] sm:$0xff]
    %v235 = vld [vmem:[#allocation5 + $0x390] sm:$0xff]
    %v236 = vld [vmem:[#allocation5 + $0x398] sm:$0xff]
    %v237 = vld [vmem:[#allocation5 + $0x3a0] sm:$0xff]
    %v238 = vld [vmem:[#allocation5 + $0x3a8] sm:$0xff]
    %v239 = vld [vmem:[#allocation5 + $0x3b0] sm:$0xff]
    %v240 = vld [vmem:[#allocation5 + $0x3b8] sm:$0xff]
    %v241 = vld [vmem:[#allocation5 + $0x3c0] sm:$0xff]
    %v242 = vld [vmem:[#allocation5 + $0x3c8] sm:$0xff]
    %v243 = vld [vmem:[#allocation5 + $0x3d0] sm:$0xff]
    %v244 = vld [vmem:[#allocation5 + $0x3d8] sm:$0xff]
    %v245 = vld [vmem:[#allocation5 + $0x3e0] sm:$0xff]
    %v246 = vld [vmem:[#allocation5 + $0x3e8] sm:$0xff]
    %v247 = vld [vmem:[#allocation5 + $0x3f0] sm:$0xff]
    %v248 = vld [vmem:[#allocation5 + $0x3f8] sm:$0xff]
    %v249 = vld [vmem:[#allocation5 + $0x400] sm:$0xff]
    %v250 = vld [vmem:[#allocation5 + $0x408] sm:$0xff]
    %v251 = vld [vmem:[#allocation5 + $0x410] sm:$0xff]
    %v252 = vld [vmem:[#allocation5 + $0x418] sm:$0xff]
    %v253 = vld [vmem:[#allocation5 + $0x420] sm:$0xff]
    %v254 = vld [vmem:[#allocation5 + $0x428] sm:$0xff]
    %v255 = vld [vmem:[#allocation5 + $0x430] sm:$0xff]
    %v256 = vld [vmem:[#allocation5 + $0x438] sm:$0xff]
    %v257 = vld [vmem:[#allocation5 + $0x440] sm:$0xff]
    %v258 = vld [vmem:[#allocation5 + $0x448] sm:$0xff]
    %v259 = vld [vmem:[#allocation5 + $0x450] sm:$0xff]
    %v260 = vld [vmem:[#allocation5 + $0x458] sm:$0xff]
    %v261 = vld [vmem:[#allocation5 + $0x460] sm:$0xff]
    %v262 = vld [vmem:[#allocation5 + $0x468] sm:$0xff]
    %v263 = vld [vmem:[#allocation5 + $0x470] sm:$0xff]
    %v264 = vld [vmem:[#allocation5 + $0x478] sm:$0xff]
    %v265 = vld [vmem:[#allocation5 + $0x480] sm:$0xff]
    %v266 = vld [vmem:[#allocation5 + $0x488] sm:$0xff]
    %v267 = vld [vmem:[#allocation5 + $0x490] sm:$0xff]
    %v268 = vld [vmem:[#allocation5 + $0x498] sm:$0xff]
    %v269 = vld [vmem:[#allocation5 + $0x4a0] sm:$0xff]
    %v270 = vld [vmem:[#allocation5 + $0x4a8] sm:$0xff]
    %v271 = vld [vmem:[#allocation5 + $0x4b0] sm:$0xff]
    %v272 = vld [vmem:[#allocation5 + $0x4b8] sm:$0xff]
    %v273 = vld [vmem:[#allocation5 + $0x4c0] sm:$0xff]
    %v274 = vld [vmem:[#allocation5 + $0x4c8] sm:$0xff]
    %v275 = vld [vmem:[#allocation5 + $0x4d0] sm:$0xff]
    %v276 = vld [vmem:[#allocation5 + $0x4d8] sm:$0xff]
    %v277 = vld [vmem:[#allocation5 + $0x4e0] sm:$0xff]
    %v278 = vld [vmem:[#allocation5 + $0x4e8] sm:$0xff]
    %v279 = vld [vmem:[#allocation5 + $0x4f0] sm:$0xff]
    %v280 = vld [vmem:[#allocation5 + $0x4f8] sm:$0xff]
    %v281 = vld [vmem:[#allocation5 + $0x500] sm:$0xff]
    %v282 = vld [vmem:[#allocation5 + $0x508] sm:$0xff]
    %v283 = vld [vmem:[#allocation5 + $0x510] sm:$0xff]
    %v284 = vld [vmem:[#allocation5 + $0x518] sm:$0xff]
    %v285 = vld [vmem:[#allocation5 + $0x520] sm:$0xff]
    %v286 = vld [vmem:[#allocation5 + $0x528] sm:$0xff]
    %v287 = vld [vmem:[#allocation5 + $0x530] sm:$0xff]
    %v288 = vld [vmem:[#allocation5 + $0x538] sm:$0xff]
    %v289 = vld [vmem:[#allocation5 + $0x540] sm:$0xff]
    %v290 = vld [vmem:[#allocation5 + $0x548] sm:$0xff]
    %v291 = vld [vmem:[#allocation5 + $0x550] sm:$0xff]
    %v292 = vld [vmem:[#allocation5 + $0x558] sm:$0xff]
    %v293 = vld [vmem:[#allocation5 + $0x560] sm:$0xff]
    %v294 = vld [vmem:[#allocation5 + $0x568] sm:$0xff]
    %v295 = vld [vmem:[#allocation5 + $0x570] sm:$0xff]
    %v296 = vld [vmem:[#allocation5 + $0x578] sm:$0xff]
    %v297 = vld [vmem:[#allocation5 + $0x580] sm:$0xff]
    %v298 = vld [vmem:[#allocation5 + $0x588] sm:$0xff]
    %v299 = vld [vmem:[#allocation5 + $0x590] sm:$0xff]
    %v300 = vld [vmem:[#allocation5 + $0x598] sm:$0xff]
    %v301 = vld [vmem:[#allocation5 + $0x5a0] sm:$0xff]
    %v302 = vld [vmem:[#allocation5 + $0x5a8] sm:$0xff]
    %v303 = vld [vmem:[#allocation5 + $0x5b0] sm:$0xff]
    %v304 = vld [vmem:[#allocation5 + $0x5b8] sm:$0xff]
    %v305 = vld [vmem:[#allocation5 + $0x5c0] sm:$0xff]
    %v306 = vld [vmem:[#allocation5 + $0x5c8] sm:$0xff]
    %v307 = vld [vmem:[#allocation5 + $0x5d0] sm:$0xff]
    %v308 = vld [vmem:[#allocation5 + $0x5d8] sm:$0xff]
    %v309 = vld [vmem:[#allocation5 + $0x5e0] sm:$0xff]
    %v310 = vld [vmem:[#allocation5 + $0x5e8] sm:$0xff]
    %v311 = vld [vmem:[#allocation5 + $0x5f0] sm:$0xff]
    %v312 = vld [vmem:[#allocation5 + $0x5f8] sm:$0xff]
    %v313 = vld [vmem:[#allocation5 + $0x600] sm:$0xff]
    %v314 = vld [vmem:[#allocation5 + $0x608] sm:$0xff]
    %v315 = vld [vmem:[#allocation5 + $0x610] sm:$0xff]
    %v316 = vld [vmem:[#allocation5 + $0x618] sm:$0xff]
    %v317 = vld [vmem:[#allocation5 + $0x620] sm:$0xff]
    %v318 = vld [vmem:[#allocation5 + $0x628] sm:$0xff]
    %v319 = vld [vmem:[#allocation5 + $0x630] sm:$0xff]
    %v320 = vld [vmem:[#allocation5 + $0x638] sm:$0xff]
    %v321 = vld [vmem:[#allocation5 + $0x640] sm:$0xff]
    %v322 = vld [vmem:[#allocation5 + $0x648] sm:$0xff]
    %v323 = vld [vmem:[#allocation5 + $0x650] sm:$0xff]
    %v324 = vld [vmem:[#allocation5 + $0x658] sm:$0xff]
    %v325 = vld [vmem:[#allocation5 + $0x660] sm:$0xff]
    %v326 = vld [vmem:[#allocation5 + $0x668] sm:$0xff]
    %v327 = vld [vmem:[#allocation5 + $0x670] sm:$0xff]
    %v328 = vld [vmem:[#allocation5 + $0x678] sm:$0xff]
    %v329 = vld [vmem:[#allocation5 + $0x680] sm:$0xff]
    %v330 = vld [vmem:[#allocation5 + $0x688] sm:$0xff]
    %v331 = vld [vmem:[#allocation5 + $0x690] sm:$0xff]
    %v332 = vld [vmem:[#allocation5 + $0x698] sm:$0xff]
    %v333 = vld [vmem:[#allocation5 + $0x6a0] sm:$0xff]
    %v334 = vld [vmem:[#allocation5 + $0x6a8] sm:$0xff]
    %v335 = vld [vmem:[#allocation5 + $0x6b0] sm:$0xff]
    %v336 = vld [vmem:[#allocation5 + $0x6b8] sm:$0xff]
    %v337 = vld [vmem:[#allocation5 + $0x6c0] sm:$0xff]
    %v338 = vld [vmem:[#allocation5 + $0x6c8] sm:$0xff]
    %v339 = vld [vmem:[#allocation5 + $0x6d0] sm:$0xff]
    %v340 = vld [vmem:[#allocation5 + $0x6d8] sm:$0xff]
    %v341 = vld [vmem:[#allocation5 + $0x6e0] sm:$0xff]
    %v342 = vld [vmem:[#allocation5 + $0x6e8] sm:$0xff]
    %v343 = vld [vmem:[#allocation5 + $0x6f0] sm:$0xff]
    %v344 = vld [vmem:[#allocation5 + $0x6f8] sm:$0xff]
    %v345 = vld [vmem:[#allocation5 + $0x700] sm:$0xff]
    %v346 = vld [vmem:[#allocation5 + $0x708] sm:$0xff]
    %v347 = vld [vmem:[#allocation5 + $0x710] sm:$0xff]
    %v348 = vld [vmem:[#allocation5 + $0x718] sm:$0xff]
    %v349 = vld [vmem:[#allocation5 + $0x720] sm:$0xff]
    %v350 = vld [vmem:[#allocation5 + $0x728] sm:$0xff]
    %v351 = vld [vmem:[#allocation5 + $0x730] sm:$0xff]
    %v352 = vld [vmem:[#allocation5 + $0x738] sm:$0xff]
    %v353 = vld [vmem:[#allocation5 + $0x740] sm:$0xff]
    %v354 = vld [vmem:[#allocation5 + $0x748] sm:$0xff]
    %v355 = vld [vmem:[#allocation5 + $0x750] sm:$0xff]
    %v356 = vld [vmem:[#allocation5 + $0x758] sm:$0xff]
    %v357 = vld [vmem:[#allocation5 + $0x760] sm:$0xff]
    %v358 = vld [vmem:[#allocation5 + $0x768] sm:$0xff]
    %v359 = vld [vmem:[#allocation5 + $0x770] sm:$0xff]
    %v360 = vld [vmem:[#allocation5 + $0x778] sm:$0xff]
    %v361 = vld [vmem:[#allocation5 + $0x780] sm:$0xff]
    %v362 = vld [vmem:[#allocation5 + $0x788] sm:$0xff]
    %v363 = vld [vmem:[#allocation5 + $0x790] sm:$0xff]
    %v364 = vld [vmem:[#allocation5 + $0x798] sm:$0xff]
    %v365 = vld [vmem:[#allocation5 + $0x7a0] sm:$0xff]
    %v366 = vld [vmem:[#allocation5 + $0x7a8] sm:$0xff]
    %v367 = vld [vmem:[#allocation5 + $0x7b0] sm:$0xff]
    %v368 = vld [vmem:[#allocation5 + $0x7b8] sm:$0xff]
    %v369 = vld [vmem:[#allocation5 + $0x7c0] sm:$0xff]
    %v370 = vld [vmem:[#allocation5 + $0x7c8] sm:$0xff]
    %v371 = vld [vmem:[#allocation5 + $0x7d0] sm:$0xff]
    %v372 = vld [vmem:[#allocation5 + $0x7d8] sm:$0xff]
    %v373 = vld [vmem:[#allocation5 + $0x7e0] sm:$0xff]
    %v374 = vld [vmem:[#allocation5 + $0x7e8] sm:$0xff]
    %v375 = vld [vmem:[#allocation5 + $0x7f0] sm:$0xff]
    %v376 = vld [vmem:[#allocation5 + $0x7f8] sm:$0xff]
    %v377 = vld [vmem:[#allocation5 + $0x800] sm:$0xff]
    %v378 = vld [vmem:[#allocation5 + $0x808] sm:$0xff]
    %v379 = vld [vmem:[#allocation5 + $0x810] sm:$0xff]
    %v380 = vld [vmem:[#allocation5 + $0x818] sm:$0xff]
    %v381 = vld [vmem:[#allocation5 + $0x820] sm:$0xff]
    %v382 = vld [vmem:[#allocation5 + $0x828] sm:$0xff]
    %v383 = vld [vmem:[#allocation5 + $0x830] sm:$0xff]
    %v384 = vld [vmem:[#allocation5 + $0x838] sm:$0xff]
    %v385 = vld [vmem:[#allocation5 + $0x840] sm:$0xff]
    %v386 = vld [vmem:[#allocation5 + $0x848] sm:$0xff]
    %v387 = vld [vmem:[#allocation5 + $0x850] sm:$0xff]
    %v388 = vld [vmem:[#allocation5 + $0x858] sm:$0xff]
    %v389 = vld [vmem:[#allocation5 + $0x860] sm:$0xff]
    %v390 = vld [vmem:[#allocation5 + $0x868] sm:$0xff]
    %v391 = vld [vmem:[#allocation5 + $0x870] sm:$0xff]
    %v392 = vld [vmem:[#allocation5 + $0x878] sm:$0xff]
    %v393 = vld [vmem:[#allocation5 + $0x880] sm:$0xff]
    %v394 = vld [vmem:[#allocation5 + $0x888] sm:$0xff]
    %v395 = vld [vmem:[#allocation5 + $0x890] sm:$0xff]
    %v396 = vld [vmem:[#allocation5 + $0x898] sm:$0xff]
    %v397 = vld [vmem:[#allocation5 + $0x8a0] sm:$0xff]
    %v398 = vld [vmem:[#allocation5 + $0x8a8] sm:$0xff]
    %v399 = vld [vmem:[#allocation5 + $0x8b0] sm:$0xff]
    %v400 = vld [vmem:[#allocation5 + $0x8b8] sm:$0xff]
    %v401 = vld [vmem:[#allocation5 + $0x8c0] sm:$0xff]
    %v402 = vld [vmem:[#allocation5 + $0x8c8] sm:$0xff]
    %v403 = vld [vmem:[#allocation5 + $0x8d0] sm:$0xff]
    %v404 = vld [vmem:[#allocation5 + $0x8d8] sm:$0xff]
    %v405 = vld [vmem:[#allocation5 + $0x8e0] sm:$0xff]
    %v406 = vld [vmem:[#allocation5 + $0x8e8] sm:$0xff]
    %v407 = vld [vmem:[#allocation5 + $0x8f0] sm:$0xff]
    %v408 = vld [vmem:[#allocation5 + $0x8f8] sm:$0xff]
    %v409 = vld [vmem:[#allocation5 + $0x900] sm:$0xff]
    %v410 = vld [vmem:[#allocation5 + $0x908] sm:$0xff]
    %v411 = vld [vmem:[#allocation5 + $0x910] sm:$0xff]
    %v412 = vld [vmem:[#allocation5 + $0x918] sm:$0xff]
    %v413 = vld [vmem:[#allocation5 + $0x920] sm:$0xff]
    %v414 = vld [vmem:[#allocation5 + $0x928] sm:$0xff]
    %v415 = vld [vmem:[#allocation5 + $0x930] sm:$0xff]
    %v416 = vld [vmem:[#allocation5 + $0x938] sm:$0xff]
    %v417 = vld [vmem:[#allocation5 + $0x940] sm:$0xff]
    %v418 = vld [vmem:[#allocation5 + $0x948] sm:$0xff]
    %v419 = vld [vmem:[#allocation5 + $0x950] sm:$0xff]
    %v420 = vld [vmem:[#allocation5 + $0x958] sm:$0xff]
    %v421 = vld [vmem:[#allocation5 + $0x960] sm:$0xff]
    %v422 = vld [vmem:[#allocation5 + $0x968] sm:$0xff]
    %v423 = vld [vmem:[#allocation5 + $0x970] sm:$0xff]
    %v424 = vld [vmem:[#allocation5 + $0x978] sm:$0xff]
    %v425 = vld [vmem:[#allocation5 + $0x980] sm:$0xff]
    %v426 = vld [vmem:[#allocation5 + $0x988] sm:$0xff]
    %v427 = vld [vmem:[#allocation5 + $0x990] sm:$0xff]
    %v428 = vld [vmem:[#allocation5 + $0x998] sm:$0xff]
    %v429 = vld [vmem:[#allocation5 + $0x9a0] sm:$0xff]
    %v430 = vld [vmem:[#allocation5 + $0x9a8] sm:$0xff]
    %v431 = vld [vmem:[#allocation5 + $0x9b0] sm:$0xff]
    %v432 = vld [vmem:[#allocation5 + $0x9b8] sm:$0xff]
    %v433 = vld [vmem:[#allocation5 + $0x9c0] sm:$0xff]
    %v434 = vld [vmem:[#allocation5 + $0x9c8] sm:$0xff]
    %v435 = vld [vmem:[#allocation5 + $0x9d0] sm:$0xff]
    %v436 = vld [vmem:[#allocation5 + $0x9d8] sm:$0xff]
    %v437 = vld [vmem:[#allocation5 + $0x9e0] sm:$0xff]
    %v438 = vld [vmem:[#allocation5 + $0x9e8] sm:$0xff]
    %v439 = vld [vmem:[#allocation5 + $0x9f0] sm:$0xff]
    %v440 = vld [vmem:[#allocation5 + $0x9f8] sm:$0xff]
    %v441 = vld [vmem:[#allocation5 + $0xa00] sm:$0xff]
    %v442 = vld [vmem:[#allocation5 + $0xa08] sm:$0xff]
    %v443 = vld [vmem:[#allocation5 + $0xa10] sm:$0xff]
    %v444 = vld [vmem:[#allocation5 + $0xa18] sm:$0xff]
    %v445 = vld [vmem:[#allocation5 + $0xa20] sm:$0xff]
    %v446 = vld [vmem:[#allocation5 + $0xa28] sm:$0xff]
    %v447 = vld [vmem:[#allocation5 + $0xa30] sm:$0xff]
    %v448 = vld [vmem:[#allocation5 + $0xa38] sm:$0xff]
    %v449 = vld [vmem:[#allocation5 + $0xa40] sm:$0xff]
    %v450 = vld [vmem:[#allocation5 + $0xa48] sm:$0xff]
    %v451 = vld [vmem:[#allocation5 + $0xa50] sm:$0xff]
    %v452 = vld [vmem:[#allocation5 + $0xa58] sm:$0xff]
    %v453 = vld [vmem:[#allocation5 + $0xa60] sm:$0xff]
    %v454 = vld [vmem:[#allocation5 + $0xa68] sm:$0xff]
    %v455 = vld [vmem:[#allocation5 + $0xa70] sm:$0xff]
    %v456 = vld [vmem:[#allocation5 + $0xa78] sm:$0xff]
    %v457 = vld [vmem:[#allocation5 + $0xa80] sm:$0xff]
    %v458 = vld [vmem:[#allocation5 + $0xa88] sm:$0xff]
    %v459 = vld [vmem:[#allocation5 + $0xa90] sm:$0xff]
    %v460 = vld [vmem:[#allocation5 + $0xa98] sm:$0xff]
    %v461 = vld [vmem:[#allocation5 + $0xaa0] sm:$0xff]
    %v462 = vld [vmem:[#allocation5 + $0xaa8] sm:$0xff]
    %v463 = vld [vmem:[#allocation5 + $0xab0] sm:$0xff]
    %v464 = vld [vmem:[#allocation5 + $0xab8] sm:$0xff]
    %v465 = vld [vmem:[#allocation5 + $0xac0] sm:$0xff]
    %v466 = vld [vmem:[#allocation5 + $0xac8] sm:$0xff]
    %v467 = vld [vmem:[#allocation5 + $0xad0] sm:$0xff]
    %v468 = vld [vmem:[#allocation5 + $0xad8] sm:$0xff]
    %v469 = vld [vmem:[#allocation5 + $0xae0] sm:$0xff]
    %v470 = vld [vmem:[#allocation5 + $0xae8] sm:$0xff]
    %v471 = vld [vmem:[#allocation5 + $0xaf0] sm:$0xff]
    %v472 = vld [vmem:[#allocation5 + $0xaf8] sm:$0xff]
    %v473 = vld [vmem:[#allocation5 + $0xb00] sm:$0xff]
    %v474 = vld [vmem:[#allocation5 + $0xb08] sm:$0xff]
    %v475 = vld [vmem:[#allocation5 + $0xb10] sm:$0xff]
    %v476 = vld [vmem:[#allocation5 + $0xb18] sm:$0xff]
    %v477 = vld [vmem:[#allocation5 + $0xb20] sm:$0xff]
    %v478 = vld [vmem:[#allocation5 + $0xb28] sm:$0xff]
    %v479 = vld [vmem:[#allocation5 + $0xb30] sm:$0xff]
    %v480 = vld [vmem:[#allocation5 + $0xb38] sm:$0xff]
    %v481 = vld [vmem:[#allocation5 + $0xb40] sm:$0xff]
    %v482 = vld [vmem:[#allocation5 + $0xb48] sm:$0xff]
    %v483 = vld [vmem:[#allocation5 + $0xb50] sm:$0xff]
    %v484 = vld [vmem:[#allocation5 + $0xb58] sm:$0xff]
    %v485 = vld [vmem:[#allocation5 + $0xb60] sm:$0xff]
    %v486 = vld [vmem:[#allocation5 + $0xb68] sm:$0xff]
    %v487 = vld [vmem:[#allocation5 + $0xb70] sm:$0xff]
    %v488 = vld [vmem:[#allocation5 + $0xb78] sm:$0xff]
    %v489 = vld [vmem:[#allocation5 + $0xb80] sm:$0xff]
    %v490 = vld [vmem:[#allocation5 + $0xb88] sm:$0xff]
    %v491 = vld [vmem:[#allocation5 + $0xb90] sm:$0xff]
    %v492 = vld [vmem:[#allocation5 + $0xb98] sm:$0xff]
    %v493 = vld [vmem:[#allocation5 + $0xba0] sm:$0xff]
    %v494 = vld [vmem:[#allocation5 + $0xba8] sm:$0xff]
    %v495 = vld [vmem:[#allocation5 + $0xbb0] sm:$0xff]
    %v496 = vld [vmem:[#allocation5 + $0xbb8] sm:$0xff]
    %v497 = vld [vmem:[#allocation5 + $0xbc0] sm:$0xff]
    %v498 = vld [vmem:[#allocation5 + $0xbc8] sm:$0xff]
    %v499 = vld [vmem:[#allocation5 + $0xbd0] sm:$0xff]
    %v500 = vld [vmem:[#allocation5 + $0xbd8] sm:$0xff]
    %v501 = vld [vmem:[#allocation5 + $0xbe0] sm:$0xff]
    %v502 = vld [vmem:[#allocation5 + $0xbe8] sm:$0xff]
    %v503 = vld [vmem:[#allocation5 + $0xbf0] sm:$0xff]
    %v504 = vld [vmem:[#allocation5 + $0xbf8] sm:$0xff]
    %v505 = vld [vmem:[#allocation5 + $0xc00] sm:$0xff]
    %v506 = vld [vmem:[#allocation5 + $0xc08] sm:$0xff]
    %v507 = vld [vmem:[#allocation5 + $0xc10] sm:$0xff]
    %v508 = vld [vmem:[#allocation5 + $0xc18] sm:$0xff]
    %v509 = vld [vmem:[#allocation5 + $0xc20] sm:$0xff]
    %v510 = vld [vmem:[#allocation5 + $0xc28] sm:$0xff]
    %v511 = vld [vmem:[#allocation5 + $0xc30] sm:$0xff]
    %v512 = vld [vmem:[#allocation5 + $0xc38] sm:$0xff]
    %v513 = vld [vmem:[#allocation7] sm:$0xf]
    %v515 = vlaneseq
    %v516 = vshrl.u32 %v515, 7
    %v517 = vsub.s32 0, %v516
    %v518 = vrot.slane %v513, %v517
    %v519 = vlaneseq
    %v520 = vshrl.u32 %v519, 7
    %v521 = vsub.s32 1, %v520
    %v522 = vrot.slane %v513, %v521
    %v523 = vlaneseq
    %v524 = vshrl.u32 %v523, 7
    %v525 = vsub.s32 2, %v524
    %v526 = vrot.slane %v513, %v525
    %v527 = vlaneseq
    %v528 = vshrl.u32 %v527, 7
    %v529 = vsub.s32 3, %v528
    %v530 = vrot.slane %v513, %v529
    %vm535 = vcmask 130048
    %v537 = vsel %vm535, %v120, 0
    %539 = vmatprep.subr.mxu0 %v122
    %540 = vmatpush1.msra.mxu0 %v121
    %541 = vmatprep.subr.mxu0 %v126
    %542 = vmatpush1.msra.mxu0 %v125
    %543 = vmatprep.subr.mxu0 %v130
    %544 = vmatpush1.msra.mxu0 %v129
    %545 = vmatprep.subr.mxu0 %v134
    %546 = vmatpush1.msra.mxu0 %v133
    %547 = vmatprep.subr.mxu0 %v138
    %548 = vmatpush1.msra.mxu0 %v137
    %549 = vmatprep.subr.mxu0 %v142
    %550 = vmatpush1.msra.mxu0 %v141
    %551 = vmatprep.subr.mxu0 %v146
    %552 = vmatpush1.msra.mxu0 %v145
    %553 = vmatprep.subr.mxu0 %v150
    %554 = vmatpush1.msra.mxu0 %v149
    %555 = vmatprep.subr.mxu0 %v154
    %556 = vmatpush1.msra.mxu0 %v153
    %557 = vmatprep.subr.mxu0 %v158
    %558 = vmatpush1.msra.mxu0 %v157
    %559 = vmatprep.subr.mxu0 %v162
    %560 = vmatpush1.msra.mxu0 %v161
    %561 = vmatprep.subr.mxu0 %v166
    %562 = vmatpush1.msra.mxu0 %v165
    %563 = vmatprep.subr.mxu0 %v170
    %564 = vmatpush1.msra.mxu0 %v169
    %565 = vmatprep.subr.mxu0 %v174
    %566 = vmatpush1.msra.mxu0 %v173
    %567 = vmatprep.subr.mxu0 %v178
    %568 = vmatpush1.msra.mxu0 %v177
    %569 = vmatprep.subr.mxu0 %v182
    %570 = vmatpush1.msra.mxu0 %v181
    %571 = vmatprep.subr.mxu0 %v186
    %572 = vmatpush1.msra.mxu0 %v185
    %573 = vmatprep.subr.mxu0 %v190
    %574 = vmatpush1.msra.mxu0 %v189
    %575 = vmatprep.subr.mxu0 %v194
    %576 = vmatpush1.msra.mxu0 %v193
    %577 = vmatprep.subr.mxu0 %v198
    %578 = vmatpush1.msra.mxu0 %v197
    %579 = vmatprep.subr.mxu0 %v202
    %580 = vmatpush1.msra.mxu0 %v201
    %581 = vmatprep.subr.mxu0 %v206
    %582 = vmatpush1.msra.mxu0 %v205
    %583 = vmatprep.subr.mxu0 %v210
    %584 = vmatpush1.msra.mxu0 %v209
    %585 = vmatprep.subr.mxu0 %v214
    %586 = vmatpush1.msra.mxu0 %v213
    %587 = vmatprep.subr.mxu0 %v218
    %588 = vmatpush1.msra.mxu0 %v217
    %589 = vmatprep.subr.mxu0 %v222
    %590 = vmatpush1.msra.mxu0 %v221
    %591 = vmatprep.subr.mxu0 %v226
    %592 = vmatpush1.msra.mxu0 %v225
    %593 = vmatprep.subr.mxu0 %v230
    %594 = vmatpush1.msra.mxu0 %v229
    %595 = vmatprep.subr.mxu0 %v234
    %596 = vmatpush1.msra.mxu0 %v233
    %597 = vmatprep.subr.mxu0 %v238
    %598 = vmatpush1.msra.mxu0 %v237
    %599 = vmatprep.subr.mxu0 %v242
    %600 = vmatpush1.msra.mxu0 %v241
    %601 = vmatprep.subr.mxu0 %v246
    %602 = vmatpush1.msra.mxu0 %v245
    %603 = vmatprep.mubr.f32.mxu0 %v115
    %604 = vmatmul.mubr.f32.gmra.mrb[0].mxu0 %v114
    %v605 = vpop.f32.mrb[0].mxu0
    %v606 = vadd.f32 %v518, %v605
    %v607 = vpop.f32.mrb[0].mxu0
    %v608 = vadd.f32 %v522, %v607
    %609 = vdwg.mxu0
    %610 = vmatprep.subr.mxu0 %v250
    %611 = vmatpush1.msra.mxu0 %v249
    %612 = vmatprep.subr.mxu0 %v254
    %613 = vmatpush1.msra.mxu0 %v253
    %614 = vmatprep.subr.mxu0 %v258
    %615 = vmatpush1.msra.mxu0 %v257
    %616 = vmatprep.subr.mxu0 %v262
    %617 = vmatpush1.msra.mxu0 %v261
    %618 = vmatprep.subr.mxu0 %v266
    %619 = vmatpush1.msra.mxu0 %v265
    %620 = vmatprep.subr.mxu0 %v270
    %621 = vmatpush1.msra.mxu0 %v269
    %622 = vmatprep.subr.mxu0 %v274
    %623 = vmatpush1.msra.mxu0 %v273
    %624 = vmatprep.subr.mxu0 %v278
    %625 = vmatpush1.msra.mxu0 %v277
    %626 = vmatprep.subr.mxu0 %v282
    %627 = vmatpush1.msra.mxu0 %v281
    %628 = vmatprep.subr.mxu0 %v286
    %629 = vmatpush1.msra.mxu0 %v285
    %630 = vmatprep.subr.mxu0 %v290
    %631 = vmatpush1.msra.mxu0 %v289
    %632 = vmatprep.subr.mxu0 %v294
    %633 = vmatpush1.msra.mxu0 %v293
    %634 = vmatprep.subr.mxu0 %v298
    %635 = vmatpush1.msra.mxu0 %v297
    %636 = vmatprep.subr.mxu0 %v302
    %637 = vmatpush1.msra.mxu0 %v301
    %638 = vmatprep.subr.mxu0 %v306
    %639 = vmatpush1.msra.mxu0 %v305
    %640 = vmatprep.subr.mxu0 %v310
    %641 = vmatpush1.msra.mxu0 %v309
    %642 = vmatprep.subr.mxu0 %v314
    %643 = vmatpush1.msra.mxu0 %v313
    %644 = vmatprep.subr.mxu0 %v318
    %645 = vmatpush1.msra.mxu0 %v317
    %646 = vmatprep.subr.mxu0 %v322
    %647 = vmatpush1.msra.mxu0 %v321
    %648 = vmatprep.subr.mxu0 %v326
    %649 = vmatpush1.msra.mxu0 %v325
    %650 = vmatprep.subr.mxu0 %v330
    %651 = vmatpush1.msra.mxu0 %v329
    %652 = vmatprep.subr.mxu0 %v334
    %653 = vmatpush1.msra.mxu0 %v333
    %654 = vmatprep.subr.mxu0 %v338
    %655 = vmatpush1.msra.mxu0 %v337
    %656 = vmatprep.subr.mxu0 %v342
    %657 = vmatpush1.msra.mxu0 %v341
    %658 = vmatprep.subr.mxu0 %v346
    %659 = vmatpush1.msra.mxu0 %v345
    %660 = vmatprep.subr.mxu0 %v350
    %661 = vmatpush1.msra.mxu0 %v349
    %662 = vmatprep.subr.mxu0 %v354
    %663 = vmatpush1.msra.mxu0 %v353
    %664 = vmatprep.subr.mxu0 %v358
    %665 = vmatpush1.msra.mxu0 %v357
    %666 = vmatprep.subr.mxu0 %v362
    %667 = vmatpush1.msra.mxu0 %v361
    %668 = vmatprep.subr.mxu0 %v366
    %669 = vmatpush1.msra.mxu0 %v365
    %670 = vmatprep.subr.mxu0 %v370
    %671 = vmatpush1.msra.mxu0 %v369
    %672 = vmatprep.subr.mxu0 %v374
    %673 = vmatpush1.msra.mxu0 %v373
    %674 = vmatprep.mubr.f32.mxu0 %v117
    %675 = vmatmul.mubr.f32.gmra.mrb[0].mxu0 %v116
    %v676 = vpop.f32.mrb[0].mxu0
    %v677 = vadd.f32 %v606, %v676
    %v678 = vpop.f32.mrb[0].mxu0
    %v679 = vadd.f32 %v608, %v678
    %680 = vdwg.mxu0
    %681 = vmatprep.subr.mxu0 %v378
    %682 = vmatpush1.msra.mxu0 %v377
    %683 = vmatprep.subr.mxu0 %v382
    %684 = vmatpush1.msra.mxu0 %v381
    %685 = vmatprep.subr.mxu0 %v386
    %686 = vmatpush1.msra.mxu0 %v385
    %687 = vmatprep.subr.mxu0 %v390
    %688 = vmatpush1.msra.mxu0 %v389
    %689 = vmatprep.subr.mxu0 %v394
    %690 = vmatpush1.msra.mxu0 %v393
    %691 = vmatprep.subr.mxu0 %v398
    %692 = vmatpush1.msra.mxu0 %v397
    %693 = vmatprep.subr.mxu0 %v402
    %694 = vmatpush1.msra.mxu0 %v401
    %695 = vmatprep.subr.mxu0 %v406
    %696 = vmatpush1.msra.mxu0 %v405
    %697 = vmatprep.subr.mxu0 %v410
    %698 = vmatpush1.msra.mxu0 %v409
    %699 = vmatprep.subr.mxu0 %v414
    %700 = vmatpush1.msra.mxu0 %v413
    %701 = vmatprep.subr.mxu0 %v418
    %702 = vmatpush1.msra.mxu0 %v417
    %703 = vmatprep.subr.mxu0 %v422
    %704 = vmatpush1.msra.mxu0 %v421
    %705 = vmatprep.subr.mxu0 %v426
    %706 = vmatpush1.msra.mxu0 %v425
    %707 = vmatprep.subr.mxu0 %v430
    %708 = vmatpush1.msra.mxu0 %v429
    %709 = vmatprep.subr.mxu0 %v434
    %710 = vmatpush1.msra.mxu0 %v433
    %711 = vmatprep.subr.mxu0 %v438
    %712 = vmatpush1.msra.mxu0 %v437
    %713 = vmatprep.subr.mxu0 %v442
    %714 = vmatpush1.msra.mxu0 %v441
    %715 = vmatprep.subr.mxu0 %v446
    %716 = vmatpush1.msra.mxu0 %v445
    %717 = vmatprep.subr.mxu0 %v450
    %718 = vmatpush1.msra.mxu0 %v449
    %719 = vmatprep.subr.mxu0 %v454
    %720 = vmatpush1.msra.mxu0 %v453
    %721 = vmatprep.subr.mxu0 %v458
    %722 = vmatpush1.msra.mxu0 %v457
    %723 = vmatprep.subr.mxu0 %v462
    %724 = vmatpush1.msra.mxu0 %v461
    %725 = vmatprep.subr.mxu0 %v466
    %726 = vmatpush1.msra.mxu0 %v465
    %727 = vmatprep.subr.mxu0 %v470
    %728 = vmatpush1.msra.mxu0 %v469
    %729 = vmatprep.subr.mxu0 %v474
    %730 = vmatpush1.msra.mxu0 %v473
    %731 = vmatprep.subr.mxu0 %v478
    %732 = vmatpush1.msra.mxu0 %v477
    %733 = vmatprep.subr.mxu0 %v482
    %734 = vmatpush1.msra.mxu0 %v481
    %735 = vmatprep.subr.mxu0 %v486
    %736 = vmatpush1.msra.mxu0 %v485
    %737 = vmatprep.subr.mxu0 %v490
    %738 = vmatpush1.msra.mxu0 %v489
    %739 = vmatprep.subr.mxu0 %v494
    %740 = vmatpush1.msra.mxu0 %v493
    %741 = vmatprep.subr.mxu0 %v498
    %742 = vmatpush1.msra.mxu0 %v497
    %743 = vmatprep.subr.mxu0 %v502
    %744 = vmatpush1.msra.mxu0 %v501
    %745 = vmatprep.mubr.f32.mxu0 %v119
    %746 = vmatmul.mubr.f32.gmra.mrb[0].mxu0 %v118
    %v747 = vpop.f32.mrb[0].mxu0
    %v748 = vadd.f32 %v677, %v747
    %v749 = vpop.f32.mrb[0].mxu0
    %v750 = vadd.f32 %v679, %v749
    %751 = vdwg.mxu0
    %752 = vmatprep.subr.mxu0 %v506
    %753 = vmatpush1.msra.mxu0 %v505
    %754 = vmatprep.subr.mxu0 %v510
    %755 = vmatpush1.msra.mxu0 %v509
    %756 = vmatprep.subr.mxu0 0.0
    %757 = vmatpush1.msra.mxu0 0.0
    %758 = vmatprep.subr.mxu0 0.0
    %759 = vmatpush1.msra.mxu0 0.0
    %760 = vmatprep.subr.mxu0 0.0
    %761 = vmatpush1.msra.mxu0 0.0
    %762 = vmatprep.subr.mxu0 0.0
    %763 = vmatpush1.msra.mxu0 0.0
    %764 = vmatprep.subr.mxu0 0.0
    %765 = vmatpush1.msra.mxu0 0.0
    %766 = vmatprep.subr.mxu0 0.0
    %767 = vmatpush1.msra.mxu0 0.0
    %768 = vmatprep.subr.mxu0 0.0
    %769 = vmatpush1.msra.mxu0 0.0
    %770 = vmatprep.subr.mxu0 0.0
    %771 = vmatpush1.msra.mxu0 0.0
    %772 = vmatprep.subr.mxu0 0.0
    %773 = vmatpush1.msra.mxu0 0.0
    %774 = vmatprep.subr.mxu0 0.0
    %775 = vmatpush1.msra.mxu0 0.0
    %776 = vmatprep.subr.mxu0 0.0
    %777 = vmatpush1.msra.mxu0 0.0
    %778 = vmatprep.subr.mxu0 0.0
    %779 = vmatpush1.msra.mxu0 0.0
    %780 = vmatprep.subr.mxu0 0.0
    %781 = vmatpush1.msra.mxu0 0.0
    %782 = vmatprep.subr.mxu0 0.0
    %783 = vmatpush1.msra.mxu0 0.0
    %784 = vmatprep.subr.mxu0 0.0
    %785 = vmatpush1.msra.mxu0 0.0
    %786 = vmatprep.subr.mxu0 0.0
    %787 = vmatpush1.msra.mxu0 0.0
    %788 = vmatprep.subr.mxu0 0.0
    %789 = vmatpush1.msra.mxu0 0.0
    %790 = vmatprep.subr.mxu0 0.0
    %791 = vmatpush1.msra.mxu0 0.0
    %792 = vmatprep.subr.mxu0 0.0
    %793 = vmatpush1.msra.mxu0 0.0
    %794 = vmatprep.subr.mxu0 0.0
    %795 = vmatpush1.msra.mxu0 0.0
    %796 = vmatprep.subr.mxu0 0.0
    %797 = vmatpush1.msra.mxu0 0.0
    %798 = vmatprep.subr.mxu0 0.0
    %799 = vmatpush1.msra.mxu0 0.0
    %800 = vmatprep.subr.mxu0 0.0
    %801 = vmatpush1.msra.mxu0 0.0
    %802 = vmatprep.subr.mxu0 0.0
    %803 = vmatpush1.msra.mxu0 0.0
    %804 = vmatprep.subr.mxu0 0.0
    %805 = vmatpush1.msra.mxu0 0.0
    %806 = vmatprep.subr.mxu0 0.0
    %807 = vmatpush1.msra.mxu0 0.0
    %808 = vmatprep.subr.mxu0 0.0
    %809 = vmatpush1.msra.mxu0 0.0
    %810 = vmatprep.subr.mxu0 0.0
    %811 = vmatpush1.msra.mxu0 0.0
    %812 = vmatprep.subr.mxu0 0.0
    %813 = vmatpush1.msra.mxu0 0.0
    %814 = vmatprep.subr.mxu0 0.0
    %815 = vmatpush1.msra.mxu0 0.0
    %816 = vmatprep.mubr.f32.mxu0 0.0
    %817 = vmatmul.mubr.f32.gmra.mrb[0].mxu0 %v537
    %v818 = vpop.f32.mrb[0].mxu0
    %v819 = vadd.f32 %v748, %v818
    %v820 = vpop.f32.mrb[0].mxu0
    %v821 = vadd.f32 %v750, %v820
    %822 = vdwg.mxu0
    %823 = vmatprep.subr.mxu0 %v124
    %824 = vmatpush1.msra.mxu0 %v123
    %825 = vmatprep.subr.mxu0 %v128
    %826 = vmatpush1.msra.mxu0 %v127
    %827 = vmatprep.subr.mxu0 %v132
    %828 = vmatpush1.msra.mxu0 %v131
    %829 = vmatprep.subr.mxu0 %v136
    %830 = vmatpush1.msra.mxu0 %v135
    %831 = vmatprep.subr.mxu0 %v140
    %832 = vmatpush1.msra.mxu0 %v139
    %833 = vmatprep.subr.mxu0 %v144
    %834 = vmatpush1.msra.mxu0 %v143
    %835 = vmatprep.subr.mxu0 %v148
    %836 = vmatpush1.msra.mxu0 %v147
    %837 = vmatprep.subr.mxu0 %v152
    %838 = vmatpush1.msra.mxu0 %v151
    %839 = vmatprep.subr.mxu0 %v156
    %840 = vmatpush1.msra.mxu0 %v155
    %841 = vmatprep.subr.mxu0 %v160
    %842 = vmatpush1.msra.mxu0 %v159
    %843 = vmatprep.subr.mxu0 %v164
    %844 = vmatpush1.msra.mxu0 %v163
    %845 = vmatprep.subr.mxu0 %v168
    %846 = vmatpush1.msra.mxu0 %v167
    %847 = vmatprep.subr.mxu0 %v172
    %848 = vmatpush1.msra.mxu0 %v171
    %849 = vmatprep.subr.mxu0 %v176
    %850 = vmatpush1.msra.mxu0 %v175
    %851 = vmatprep.subr.mxu0 %v180
    %852 = vmatpush1.msra.mxu0 %v179
    %853 = vmatprep.subr.mxu0 %v184
    %854 = vmatpush1.msra.mxu0 %v183
    %855 = vmatprep.subr.mxu0 %v188
    %856 = vmatpush1.msra.mxu0 %v187
    %857 = vmatprep.subr.mxu0 %v192
    %858 = vmatpush1.msra.mxu0 %v191
    %859 = vmatprep.subr.mxu0 %v196
    %860 = vmatpush1.msra.mxu0 %v195
    %861 = vmatprep.subr.mxu0 %v200
    %862 = vmatpush1.msra.mxu0 %v199
    %863 = vmatprep.subr.mxu0 %v204
    %864 = vmatpush1.msra.mxu0 %v203
    %865 = vmatprep.subr.mxu0 %v208
    %866 = vmatpush1.msra.mxu0 %v207
    %867 = vmatprep.subr.mxu0 %v212
    %868 = vmatpush1.msra.mxu0 %v211
    %869 = vmatprep.subr.mxu0 %v216
    %870 = vmatpush1.msra.mxu0 %v215
    %871 = vmatprep.subr.mxu0 %v220
    %872 = vmatpush1.msra.mxu0 %v219
    %873 = vmatprep.subr.mxu0 %v224
    %874 = vmatpush1.msra.mxu0 %v223
    %875 = vmatprep.subr.mxu0 %v228
    %876 = vmatpush1.msra.mxu0 %v227
    %877 = vmatprep.subr.mxu0 %v232
    %878 = vmatpush1.msra.mxu0 %v231
    %879 = vmatprep.subr.mxu0 %v236
    %880 = vmatpush1.msra.mxu0 %v235
    %881 = vmatprep.subr.mxu0 %v240
    %882 = vmatpush1.msra.mxu0 %v239
    %883 = vmatprep.subr.mxu0 %v244
    %884 = vmatpush1.msra.mxu0 %v243
    %885 = vmatprep.subr.mxu0 %v248
    %886 = vmatpush1.msra.mxu0 %v247
    %887 = vmatprep.mubr.f32.mxu0 %v115
    %888 = vmatmul.mubr.f32.gmra.mrb[0].mxu0 %v114
    %v889 = vpop.f32.mrb[0].mxu0
    %v890 = vadd.f32 %v526, %v889
    %v891 = vpop.f32.mrb[0].mxu0
    %v892 = vadd.f32 %v530, %v891
    %893 = vdwg.mxu0
    %894 = vmatprep.subr.mxu0 %v252
    %895 = vmatpush1.msra.mxu0 %v251
    %896 = vmatprep.subr.mxu0 %v256
    %897 = vmatpush1.msra.mxu0 %v255
    %898 = vmatprep.subr.mxu0 %v260
    %899 = vmatpush1.msra.mxu0 %v259
    %900 = vmatprep.subr.mxu0 %v264
    %901 = vmatpush1.msra.mxu0 %v263
    %902 = vmatprep.subr.mxu0 %v268
    %903 = vmatpush1.msra.mxu0 %v267
    %904 = vmatprep.subr.mxu0 %v272
    %905 = vmatpush1.msra.mxu0 %v271
    %906 = vmatprep.subr.mxu0 %v276
    %907 = vmatpush1.msra.mxu0 %v275
    %908 = vmatprep.subr.mxu0 %v280
    %909 = vmatpush1.msra.mxu0 %v279
    %910 = vmatprep.subr.mxu0 %v284
    %911 = vmatpush1.msra.mxu0 %v283
    %912 = vmatprep.subr.mxu0 %v288
    %913 = vmatpush1.msra.mxu0 %v287
    %914 = vmatprep.subr.mxu0 %v292
    %915 = vmatpush1.msra.mxu0 %v291
    %916 = vmatprep.subr.mxu0 %v296
    %917 = vmatpush1.msra.mxu0 %v295
    %918 = vmatprep.subr.mxu0 %v300
    %919 = vmatpush1.msra.mxu0 %v299
    %920 = vmatprep.subr.mxu0 %v304
    %921 = vmatpush1.msra.mxu0 %v303
    %922 = vmatprep.subr.mxu0 %v308
    %923 = vmatpush1.msra.mxu0 %v307
    %924 = vmatprep.subr.mxu0 %v312
    %925 = vmatpush1.msra.mxu0 %v311
    %926 = vmatprep.subr.mxu0 %v316
    %927 = vmatpush1.msra.mxu0 %v315
    %928 = vmatprep.subr.mxu0 %v320
    %929 = vmatpush1.msra.mxu0 %v319
    %930 = vmatprep.subr.mxu0 %v324
    %931 = vmatpush1.msra.mxu0 %v323
    %932 = vmatprep.subr.mxu0 %v328
    %933 = vmatpush1.msra.mxu0 %v327
    %934 = vmatprep.subr.mxu0 %v332
    %935 = vmatpush1.msra.mxu0 %v331
    %936 = vmatprep.subr.mxu0 %v336
    %937 = vmatpush1.msra.mxu0 %v335
    %938 = vmatprep.subr.mxu0 %v340
    %939 = vmatpush1.msra.mxu0 %v339
    %940 = vmatprep.subr.mxu0 %v344
    %941 = vmatpush1.msra.mxu0 %v343
    %942 = vmatprep.subr.mxu0 %v348
    %943 = vmatpush1.msra.mxu0 %v347
    %944 = vmatprep.subr.mxu0 %v352
    %945 = vmatpush1.msra.mxu0 %v351
    %946 = vmatprep.subr.mxu0 %v356
    %947 = vmatpush1.msra.mxu0 %v355
    %948 = vmatprep.subr.mxu0 %v360
    %949 = vmatpush1.msra.mxu0 %v359
    %950 = vmatprep.subr.mxu0 %v364
    %951 = vmatpush1.msra.mxu0 %v363
    %952 = vmatprep.subr.mxu0 %v368
    %953 = vmatpush1.msra.mxu0 %v367
    %954 = vmatprep.subr.mxu0 %v372
    %955 = vmatpush1.msra.mxu0 %v371
    %956 = vmatprep.subr.mxu0 %v376
    %957 = vmatpush1.msra.mxu0 %v375
    %958 = vmatprep.mubr.f32.mxu0 %v117
    %959 = vmatmul.mubr.f32.gmra.mrb[0].mxu0 %v116
    %v960 = vpop.f32.mrb[0].mxu0
    %v961 = vadd.f32 %v890, %v960
    %v962 = vpop.f32.mrb[0].mxu0
    %v963 = vadd.f32 %v892, %v962
    %964 = vdwg.mxu0
    %965 = vmatprep.subr.mxu0 %v380
    %966 = vmatpush1.msra.mxu0 %v379
    %967 = vmatprep.subr.mxu0 %v384
    %968 = vmatpush1.msra.mxu0 %v383
    %969 = vmatprep.subr.mxu0 %v388
    %970 = vmatpush1.msra.mxu0 %v387
    %971 = vmatprep.subr.mxu0 %v392
    %972 = vmatpush1.msra.mxu0 %v391
    %973 = vmatprep.subr.mxu0 %v396
    %974 = vmatpush1.msra.mxu0 %v395
    %975 = vmatprep.subr.mxu0 %v400
    %976 = vmatpush1.msra.mxu0 %v399
    %977 = vmatprep.subr.mxu0 %v404
    %978 = vmatpush1.msra.mxu0 %v403
    %979 = vmatprep.subr.mxu0 %v408
    %980 = vmatpush1.msra.mxu0 %v407
    %981 = vmatprep.subr.mxu0 %v412
    %982 = vmatpush1.msra.mxu0 %v411
    %983 = vmatprep.subr.mxu0 %v416
    %984 = vmatpush1.msra.mxu0 %v415
    %985 = vmatprep.subr.mxu0 %v420
    %986 = vmatpush1.msra.mxu0 %v419
    %987 = vmatprep.subr.mxu0 %v424
    %988 = vmatpush1.msra.mxu0 %v423
    %989 = vmatprep.subr.mxu0 %v428
    %990 = vmatpush1.msra.mxu0 %v427
    %991 = vmatprep.subr.mxu0 %v432
    %992 = vmatpush1.msra.mxu0 %v431
    %993 = vmatprep.subr.mxu0 %v436
    %994 = vmatpush1.msra.mxu0 %v435
    %995 = vmatprep.subr.mxu0 %v440
    %996 = vmatpush1.msra.mxu0 %v439
    %997 = vmatprep.subr.mxu0 %v444
    %998 = vmatpush1.msra.mxu0 %v443
    %999 = vmatprep.subr.mxu0 %v448
    %1000 = vmatpush1.msra.mxu0 %v447
    %1001 = vmatprep.subr.mxu0 %v452
    %1002 = vmatpush1.msra.mxu0 %v451
    %1003 = vmatprep.subr.mxu0 %v456
    %1004 = vmatpush1.msra.mxu0 %v455
    %1005 = vmatprep.subr.mxu0 %v460
    %1006 = vmatpush1.msra.mxu0 %v459
    %1007 = vmatprep.subr.mxu0 %v464
    %1008 = vmatpush1.msra.mxu0 %v463
    %1009 = vmatprep.subr.mxu0 %v468
    %1010 = vmatpush1.msra.mxu0 %v467
    %1011 = vmatprep.subr.mxu0 %v472
    %1012 = vmatpush1.msra.mxu0 %v471
    %1013 = vmatprep.subr.mxu0 %v476
    %1014 = vmatpush1.msra.mxu0 %v475
    %1015 = vmatprep.subr.mxu0 %v480
    %1016 = vmatpush1.msra.mxu0 %v479
    %1017 = vmatprep.subr.mxu0 %v484
    %1018 = vmatpush1.msra.mxu0 %v483
    %1019 = vmatprep.subr.mxu0 %v488
    %1020 = vmatpush1.msra.mxu0 %v487
    %1021 = vmatprep.subr.mxu0 %v492
    %1022 = vmatpush1.msra.mxu0 %v491
    %1023 = vmatprep.subr.mxu0 %v496
    %1024 = vmatpush1.msra.mxu0 %v495
    %1025 = vmatprep.subr.mxu0 %v500
    %1026 = vmatpush1.msra.mxu0 %v499
    %1027 = vmatprep.subr.mxu0 %v504
    %1028 = vmatpush1.msra.mxu0 %v503
    %1029 = vmatprep.mubr.f32.mxu0 %v119
    %1030 = vmatmul.mubr.f32.gmra.mrb[0].mxu0 %v118
    %v1031 = vpop.f32.mrb[0].mxu0
    %v1032 = vadd.f32 %v961, %v1031
    %v1033 = vpop.f32.mrb[0].mxu0
    %v1034 = vadd.f32 %v963, %v1033
    %1035 = vdwg.mxu0
    %1036 = vmatprep.subr.mxu0 %v508
    %1037 = vmatpush1.msra.mxu0 %v507
    %1038 = vmatprep.subr.mxu0 %v512
    %1039 = vmatpush1.msra.mxu0 %v511
    %1040 = vmatprep.subr.mxu0 0.0
    %1041 = vmatpush1.msra.mxu0 0.0
    %1042 = vmatprep.subr.mxu0 0.0
    %1043 = vmatpush1.msra.mxu0 0.0
    %1044 = vmatprep.subr.mxu0 0.0
    %1045 = vmatpush1.msra.mxu0 0.0
    %1046 = vmatprep.subr.mxu0 0.0
    %1047 = vmatpush1.msra.mxu0 0.0
    %1048 = vmatprep.subr.mxu0 0.0
    %1049 = vmatpush1.msra.mxu0 0.0
    %1050 = vmatprep.subr.mxu0 0.0
    %1051 = vmatpush1.msra.mxu0 0.0
    %1052 = vmatprep.subr.mxu0 0.0
    %1053 = vmatpush1.msra.mxu0 0.0
    %1054 = vmatprep.subr.mxu0 0.0
    %1055 = vmatpush1.msra.mxu0 0.0
    %1056 = vmatprep.subr.mxu0 0.0
    %1057 = vmatpush1.msra.mxu0 0.0
    %1058 = vmatprep.subr.mxu0 0.0
    %1059 = vmatpush1.msra.mxu0 0.0
    %1060 = vmatprep.subr.mxu0 0.0
    %1061 = vmatpush1.msra.mxu0 0.0
    %1062 = vmatprep.subr.mxu0 0.0
    %1063 = vmatpush1.msra.mxu0 0.0
    %1064 = vmatprep.subr.mxu0 0.0
    %1065 = vmatpush1.msra.mxu0 0.0
    %1066 = vmatprep.subr.mxu0 0.0
    %1067 = vmatpush1.msra.mxu0 0.0
    %1068 = vmatprep.subr.mxu0 0.0
    %1069 = vmatpush1.msra.mxu0 0.0
    %1070 = vmatprep.subr.mxu0 0.0
    %1071 = vmatpush1.msra.mxu0 0.0
    %1072 = vmatprep.subr.mxu0 0.0
    %1073 = vmatpush1.msra.mxu0 0.0
    %1074 = vmatprep.subr.mxu0 0.0
    %1075 = vmatpush1.msra.mxu0 0.0
    %1076 = vmatprep.subr.mxu0 0.0
    %1077 = vmatpush1.msra.mxu0 0.0
    %1078 = vmatprep.subr.mxu0 0.0
    %1079 = vmatpush1.msra.mxu0 0.0
    %1080 = vmatprep.subr.mxu0 0.0
    %1081 = vmatpush1.msra.mxu0 0.0
    %1082 = vmatprep.subr.mxu0 0.0
    %1083 = vmatpush1.msra.mxu0 0.0
    %1084 = vmatprep.subr.mxu0 0.0
    %1085 = vmatpush1.msra.mxu0 0.0
    %1086 = vmatprep.subr.mxu0 0.0
    %1087 = vmatpush1.msra.mxu0 0.0
    %1088 = vmatprep.subr.mxu0 0.0
    %1089 = vmatpush1.msra.mxu0 0.0
    %1090 = vmatprep.subr.mxu0 0.0
    %1091 = vmatpush1.msra.mxu0 0.0
    %1092 = vmatprep.subr.mxu0 0.0
    %1093 = vmatpush1.msra.mxu0 0.0
    %1094 = vmatprep.subr.mxu0 0.0
    %1095 = vmatpush1.msra.mxu0 0.0
    %1096 = vmatprep.subr.mxu0 0.0
    %1097 = vmatpush1.msra.mxu0 0.0
    %1098 = vmatprep.subr.mxu0 0.0
    %1099 = vmatpush1.msra.mxu0 0.0
    %1100 = vmatprep.mubr.f32.mxu0 0.0
    %1101 = vmatmul.mubr.f32.gmra.mrb[0].mxu0 %v537
    %v1102 = vpop.f32.mrb[0].mxu0
    %v1103 = vadd.f32 %v1032, %v1102
    %v1104 = vpop.f32.mrb[0].mxu0
    %v1105 = vadd.f32 %v1034, %v1104
    %1106 = vdwg.mxu0
    %v1107 = vmax.f32 %v819, 0.0
    %v1108 = vmax.f32 %v821, 0.0
    %v1109 = vmax.f32 %v1103, 0.0
    %v1110 = vmax.f32 %v1105, 0.0
    %v1111 = vld [vmem:[#allocation8] sm:$0xff]
    %v1112 = vld [vmem:[#allocation8 + $0x8] sm:$0xff]
    %v1113 = vld [vmem:[#allocation8 + $0x10] sm:$0xff]
    %v1114 = vld [vmem:[#allocation8 + $0x18] sm:$0xff]
    %v1115 = vld [vmem:[#allocation8 + $0x20] sm:$0xff]
    %v1116 = vld [vmem:[#allocation8 + $0x28] sm:$0xff]
    %v1117 = vld [vmem:[#allocation8 + $0x30] sm:$0xff]
    %v1118 = vld [vmem:[#allocation8 + $0x38] sm:$0xff]
    %v1119 = vld [vmem:[#allocation8 + $0x40] sm:$0xff]
    %v1120 = vld [vmem:[#allocation8 + $0x48] sm:$0xff]
    %v1121 = vld [vmem:[#allocation8 + $0x50] sm:$0xff]
    %v1122 = vld [vmem:[#allocation8 + $0x58] sm:$0xff]
    %v1123 = vld [vmem:[#allocation8 + $0x60] sm:$0xff]
    %v1124 = vld [vmem:[#allocation8 + $0x68] sm:$0xff]
    %v1125 = vld [vmem:[#allocation8 + $0x70] sm:$0xff]
    %v1126 = vld [vmem:[#allocation8 + $0x78] sm:$0xff]
    %v1127 = vld [vmem:[#allocation8 + $0x80] sm:$0xff]
    %v1128 = vld [vmem:[#allocation8 + $0x88] sm:$0xff]
    %v1129 = vld [vmem:[#allocation8 + $0x90] sm:$0xff]
    %v1130 = vld [vmem:[#allocation8 + $0x98] sm:$0xff]
    %v1131 = vld [vmem:[#allocation8 + $0xa0] sm:$0xff]
    %v1132 = vld [vmem:[#allocation8 + $0xa8] sm:$0xff]
    %v1133 = vld [vmem:[#allocation8 + $0xb0] sm:$0xff]
    %v1134 = vld [vmem:[#allocation8 + $0xb8] sm:$0xff]
    %v1135 = vld [vmem:[#allocation8 + $0xc0] sm:$0xff]
    %v1136 = vld [vmem:[#allocation8 + $0xc8] sm:$0xff]
    %v1137 = vld [vmem:[#allocation8 + $0xd0] sm:$0xff]
    %v1138 = vld [vmem:[#allocation8 + $0xd8] sm:$0xff]
    %v1139 = vld [vmem:[#allocation8 + $0xe0] sm:$0xff]
    %v1140 = vld [vmem:[#allocation8 + $0xe8] sm:$0xff]
    %v1141 = vld [vmem:[#allocation8 + $0xf0] sm:$0xff]
    %v1142 = vld [vmem:[#allocation8 + $0xf8] sm:$0xff]
    %v1143 = vld [vmem:[#allocation8 + $0x100] sm:$0xff]
    %v1144 = vld [vmem:[#allocation8 + $0x108] sm:$0xff]
    %v1145 = vld [vmem:[#allocation8 + $0x110] sm:$0xff]
    %v1146 = vld [vmem:[#allocation8 + $0x118] sm:$0xff]
    %v1147 = vld [vmem:[#allocation8 + $0x120] sm:$0xff]
    %v1148 = vld [vmem:[#allocation8 + $0x128] sm:$0xff]
    %v1149 = vld [vmem:[#allocation8 + $0x130] sm:$0xff]
    %v1150 = vld [vmem:[#allocation8 + $0x138] sm:$0xff]
    %v1151 = vld [vmem:[#allocation8 + $0x140] sm:$0xff]
    %v1152 = vld [vmem:[#allocation8 + $0x148] sm:$0xff]
    %v1153 = vld [vmem:[#allocation8 + $0x150] sm:$0xff]
    %v1154 = vld [vmem:[#allocation8 + $0x158] sm:$0xff]
    %v1155 = vld [vmem:[#allocation8 + $0x160] sm:$0xff]
    %v1156 = vld [vmem:[#allocation8 + $0x168] sm:$0xff]
    %v1157 = vld [vmem:[#allocation8 + $0x170] sm:$0xff]
    %v1158 = vld [vmem:[#allocation8 + $0x178] sm:$0xff]
    %v1159 = vld [vmem:[#allocation8 + $0x180] sm:$0xff]
    %v1160 = vld [vmem:[#allocation8 + $0x188] sm:$0xff]
    %v1161 = vld [vmem:[#allocation8 + $0x190] sm:$0xff]
    %v1162 = vld [vmem:[#allocation8 + $0x198] sm:$0xff]
    %v1163 = vld [vmem:[#allocation8 + $0x1a0] sm:$0xff]
    %v1164 = vld [vmem:[#allocation8 + $0x1a8] sm:$0xff]
    %v1165 = vld [vmem:[#allocation8 + $0x1b0] sm:$0xff]
    %v1166 = vld [vmem:[#allocation8 + $0x1b8] sm:$0xff]
    %v1167 = vld [vmem:[#allocation8 + $0x1c0] sm:$0xff]
    %v1168 = vld [vmem:[#allocation8 + $0x1c8] sm:$0xff]
    %v1169 = vld [vmem:[#allocation8 + $0x1d0] sm:$0xff]
    %v1170 = vld [vmem:[#allocation8 + $0x1d8] sm:$0xff]
    %v1171 = vld [vmem:[#allocation8 + $0x1e0] sm:$0xff]
    %v1172 = vld [vmem:[#allocation8 + $0x1e8] sm:$0xff]
    %v1173 = vld [vmem:[#allocation8 + $0x1f0] sm:$0xff]
    %v1174 = vld [vmem:[#allocation8 + $0x1f8] sm:$0xff]
    %v1175 = vld [vmem:[#allocation8 + $0x200] sm:$0xff]
    %v1176 = vld [vmem:[#allocation8 + $0x208] sm:$0xff]
    %v1177 = vld [vmem:[#allocation8 + $0x210] sm:$0xff]
    %v1178 = vld [vmem:[#allocation8 + $0x218] sm:$0xff]
    %v1179 = vld [vmem:[#allocation8 + $0x220] sm:$0xff]
    %v1180 = vld [vmem:[#allocation8 + $0x228] sm:$0xff]
    %v1181 = vld [vmem:[#allocation8 + $0x230] sm:$0xff]
    %v1182 = vld [vmem:[#allocation8 + $0x238] sm:$0xff]
    %v1183 = vld [vmem:[#allocation8 + $0x240] sm:$0xff]
    %v1184 = vld [vmem:[#allocation8 + $0x248] sm:$0xff]
    %v1185 = vld [vmem:[#allocation8 + $0x250] sm:$0xff]
    %v1186 = vld [vmem:[#allocation8 + $0x258] sm:$0xff]
    %v1187 = vld [vmem:[#allocation8 + $0x260] sm:$0xff]
    %v1188 = vld [vmem:[#allocation8 + $0x268] sm:$0xff]
    %v1189 = vld [vmem:[#allocation8 + $0x270] sm:$0xff]
    %v1190 = vld [vmem:[#allocation8 + $0x278] sm:$0xff]
    %v1191 = vld [vmem:[#allocation8 + $0x280] sm:$0xff]
    %v1192 = vld [vmem:[#allocation8 + $0x288] sm:$0xff]
    %v1193 = vld [vmem:[#allocation8 + $0x290] sm:$0xff]
    %v1194 = vld [vmem:[#allocation8 + $0x298] sm:$0xff]
    %v1195 = vld [vmem:[#allocation8 + $0x2a0] sm:$0xff]
    %v1196 = vld [vmem:[#allocation8 + $0x2a8] sm:$0xff]
    %v1197 = vld [vmem:[#allocation8 + $0x2b0] sm:$0xff]
    %v1198 = vld [vmem:[#allocation8 + $0x2b8] sm:$0xff]
    %v1199 = vld [vmem:[#allocation8 + $0x2c0] sm:$0xff]
    %v1200 = vld [vmem:[#allocation8 + $0x2c8] sm:$0xff]
    %v1201 = vld [vmem:[#allocation8 + $0x2d0] sm:$0xff]
    %v1202 = vld [vmem:[#allocation8 + $0x2d8] sm:$0xff]
    %v1203 = vld [vmem:[#allocation8 + $0x2e0] sm:$0xff]
    %v1204 = vld [vmem:[#allocation8 + $0x2e8] sm:$0xff]
    %v1205 = vld [vmem:[#allocation8 + $0x2f0] sm:$0xff]
    %v1206 = vld [vmem:[#allocation8 + $0x2f8] sm:$0xff]
    %v1207 = vld [vmem:[#allocation8 + $0x300] sm:$0xff]
    %v1208 = vld [vmem:[#allocation8 + $0x308] sm:$0xff]
    %v1209 = vld [vmem:[#allocation8 + $0x310] sm:$0xff]
    %v1210 = vld [vmem:[#allocation8 + $0x318] sm:$0xff]
    %v1211 = vld [vmem:[#allocation8 + $0x320] sm:$0xff]
    %v1212 = vld [vmem:[#allocation8 + $0x328] sm:$0xff]
    %v1213 = vld [vmem:[#allocation8 + $0x330] sm:$0xff]
    %v1214 = vld [vmem:[#allocation8 + $0x338] sm:$0xff]
    %v1215 = vld [vmem:[#allocation8 + $0x340] sm:$0xff]
    %v1216 = vld [vmem:[#allocation8 + $0x348] sm:$0xff]
    %v1217 = vld [vmem:[#allocation8 + $0x350] sm:$0xff]
    %v1218 = vld [vmem:[#allocation8 + $0x358] sm:$0xff]
    %v1219 = vld [vmem:[#allocation8 + $0x360] sm:$0xff]
    %v1220 = vld [vmem:[#allocation8 + $0x368] sm:$0xff]
    %v1221 = vld [vmem:[#allocation8 + $0x370] sm:$0xff]
    %v1222 = vld [vmem:[#allocation8 + $0x378] sm:$0xff]
    %v1223 = vld [vmem:[#allocation8 + $0x380] sm:$0xff]
    %v1224 = vld [vmem:[#allocation8 + $0x388] sm:$0xff]
    %v1225 = vld [vmem:[#allocation8 + $0x390] sm:$0xff]
    %v1226 = vld [vmem:[#allocation8 + $0x398] sm:$0xff]
    %v1227 = vld [vmem:[#allocation8 + $0x3a0] sm:$0xff]
    %v1228 = vld [vmem:[#allocation8 + $0x3a8] sm:$0xff]
    %v1229 = vld [vmem:[#allocation8 + $0x3b0] sm:$0xff]
    %v1230 = vld [vmem:[#allocation8 + $0x3b8] sm:$0xff]
    %v1231 = vld [vmem:[#allocation8 + $0x3c0] sm:$0xff]
    %v1232 = vld [vmem:[#allocation8 + $0x3c8] sm:$0xff]
    %v1233 = vld [vmem:[#allocation8 + $0x3d0] sm:$0xff]
    %v1234 = vld [vmem:[#allocation8 + $0x3d8] sm:$0xff]
    %v1235 = vld [vmem:[#allocation8 + $0x3e0] sm:$0xff]
    %v1236 = vld [vmem:[#allocation8 + $0x3e8] sm:$0xff]
    %v1237 = vld [vmem:[#allocation8 + $0x3f0] sm:$0xff]
    %v1238 = vld [vmem:[#allocation8 + $0x3f8] sm:$0xff]
    %v1239 = vld [vmem:[#allocation8 + $0x400] sm:$0xff]
    %v1240 = vld [vmem:[#allocation8 + $0x408] sm:$0xff]
    %v1241 = vld [vmem:[#allocation8 + $0x410] sm:$0xff]
    %v1242 = vld [vmem:[#allocation8 + $0x418] sm:$0xff]
    %v1243 = vld [vmem:[#allocation8 + $0x420] sm:$0xff]
    %v1244 = vld [vmem:[#allocation8 + $0x428] sm:$0xff]
    %v1245 = vld [vmem:[#allocation8 + $0x430] sm:$0xff]
    %v1246 = vld [vmem:[#allocation8 + $0x438] sm:$0xff]
    %v1247 = vld [vmem:[#allocation8 + $0x440] sm:$0xff]
    %v1248 = vld [vmem:[#allocation8 + $0x448] sm:$0xff]
    %v1249 = vld [vmem:[#allocation8 + $0x450] sm:$0xff]
    %v1250 = vld [vmem:[#allocation8 + $0x458] sm:$0xff]
    %v1251 = vld [vmem:[#allocation8 + $0x460] sm:$0xff]
    %v1252 = vld [vmem:[#allocation8 + $0x468] sm:$0xff]
    %v1253 = vld [vmem:[#allocation8 + $0x470] sm:$0xff]
    %v1254 = vld [vmem:[#allocation8 + $0x478] sm:$0xff]
    %v1255 = vld [vmem:[#allocation8 + $0x480] sm:$0xff]
    %v1256 = vld [vmem:[#allocation8 + $0x488] sm:$0xff]
    %v1257 = vld [vmem:[#allocation8 + $0x490] sm:$0xff]
    %v1258 = vld [vmem:[#allocation8 + $0x498] sm:$0xff]
    %v1259 = vld [vmem:[#allocation8 + $0x4a0] sm:$0xff]
    %v1260 = vld [vmem:[#allocation8 + $0x4a8] sm:$0xff]
    %v1261 = vld [vmem:[#allocation8 + $0x4b0] sm:$0xff]
    %v1262 = vld [vmem:[#allocation8 + $0x4b8] sm:$0xff]
    %v1263 = vld [vmem:[#allocation8 + $0x4c0] sm:$0xff]
    %v1264 = vld [vmem:[#allocation8 + $0x4c8] sm:$0xff]
    %v1265 = vld [vmem:[#allocation8 + $0x4d0] sm:$0xff]
    %v1266 = vld [vmem:[#allocation8 + $0x4d8] sm:$0xff]
    %v1267 = vld [vmem:[#allocation8 + $0x4e0] sm:$0xff]
    %v1268 = vld [vmem:[#allocation8 + $0x4e8] sm:$0xff]
    %v1269 = vld [vmem:[#allocation8 + $0x4f0] sm:$0xff]
    %v1270 = vld [vmem:[#allocation8 + $0x4f8] sm:$0xff]
    %v1271 = vld [vmem:[#allocation8 + $0x500] sm:$0xff]
    %v1272 = vld [vmem:[#allocation8 + $0x508] sm:$0xff]
    %v1273 = vld [vmem:[#allocation8 + $0x510] sm:$0xff]
    %v1274 = vld [vmem:[#allocation8 + $0x518] sm:$0xff]
    %v1275 = vld [vmem:[#allocation8 + $0x520] sm:$0xff]
    %v1276 = vld [vmem:[#allocation8 + $0x528] sm:$0xff]
    %v1277 = vld [vmem:[#allocation8 + $0x530] sm:$0xff]
    %v1278 = vld [vmem:[#allocation8 + $0x538] sm:$0xff]
    %v1279 = vld [vmem:[#allocation8 + $0x540] sm:$0xff]
    %v1280 = vld [vmem:[#allocation8 + $0x548] sm:$0xff]
    %v1281 = vld [vmem:[#allocation8 + $0x550] sm:$0xff]
    %v1282 = vld [vmem:[#allocation8 + $0x558] sm:$0xff]
    %v1283 = vld [vmem:[#allocation8 + $0x560] sm:$0xff]
    %v1284 = vld [vmem:[#allocation8 + $0x568] sm:$0xff]
    %v1285 = vld [vmem:[#allocation8 + $0x570] sm:$0xff]
    %v1286 = vld [vmem:[#allocation8 + $0x578] sm:$0xff]
    %v1287 = vld [vmem:[#allocation8 + $0x580] sm:$0xff]
    %v1288 = vld [vmem:[#allocation8 + $0x588] sm:$0xff]
    %v1289 = vld [vmem:[#allocation8 + $0x590] sm:$0xff]
    %v1290 = vld [vmem:[#allocation8 + $0x598] sm:$0xff]
    %v1291 = vld [vmem:[#allocation8 + $0x5a0] sm:$0xff]
    %v1292 = vld [vmem:[#allocation8 + $0x5a8] sm:$0xff]
    %v1293 = vld [vmem:[#allocation8 + $0x5b0] sm:$0xff]
    %v1294 = vld [vmem:[#allocation8 + $0x5b8] sm:$0xff]
    %v1295 = vld [vmem:[#allocation8 + $0x5c0] sm:$0xff]
    %v1296 = vld [vmem:[#allocation8 + $0x5c8] sm:$0xff]
    %v1297 = vld [vmem:[#allocation8 + $0x5d0] sm:$0xff]
    %v1298 = vld [vmem:[#allocation8 + $0x5d8] sm:$0xff]
    %v1299 = vld [vmem:[#allocation8 + $0x5e0] sm:$0xff]
    %v1300 = vld [vmem:[#allocation8 + $0x5e8] sm:$0xff]
    %v1301 = vld [vmem:[#allocation8 + $0x5f0] sm:$0xff]
    %v1302 = vld [vmem:[#allocation8 + $0x5f8] sm:$0xff]
    %v1303 = vld [vmem:[#allocation8 + $0x600] sm:$0xff]
    %v1304 = vld [vmem:[#allocation8 + $0x608] sm:$0xff]
    %v1305 = vld [vmem:[#allocation8 + $0x610] sm:$0xff]
    %v1306 = vld [vmem:[#allocation8 + $0x618] sm:$0xff]
    %v1307 = vld [vmem:[#allocation8 + $0x620] sm:$0xff]
    %v1308 = vld [vmem:[#allocation8 + $0x628] sm:$0xff]
    %v1309 = vld [vmem:[#allocation8 + $0x630] sm:$0xff]
    %v1310 = vld [vmem:[#allocation8 + $0x638] sm:$0xff]
    %v1311 = vld [vmem:[#allocation8 + $0x640] sm:$0xff]
    %v1312 = vld [vmem:[#allocation8 + $0x648] sm:$0xff]
    %v1313 = vld [vmem:[#allocation8 + $0x650] sm:$0xff]
    %v1314 = vld [vmem:[#allocation8 + $0x658] sm:$0xff]
    %v1315 = vld [vmem:[#allocation8 + $0x660] sm:$0xff]
    %v1316 = vld [vmem:[#allocation8 + $0x668] sm:$0xff]
    %v1317 = vld [vmem:[#allocation8 + $0x670] sm:$0xff]
    %v1318 = vld [vmem:[#allocation8 + $0x678] sm:$0xff]
    %v1319 = vld [vmem:[#allocation8 + $0x680] sm:$0xff]
    %v1320 = vld [vmem:[#allocation8 + $0x688] sm:$0xff]
    %v1321 = vld [vmem:[#allocation8 + $0x690] sm:$0xff]
    %v1322 = vld [vmem:[#allocation8 + $0x698] sm:$0xff]
    %v1323 = vld [vmem:[#allocation8 + $0x6a0] sm:$0xff]
    %v1324 = vld [vmem:[#allocation8 + $0x6a8] sm:$0xff]
    %v1325 = vld [vmem:[#allocation8 + $0x6b0] sm:$0xff]
    %v1326 = vld [vmem:[#allocation8 + $0x6b8] sm:$0xff]
    %v1327 = vld [vmem:[#allocation8 + $0x6c0] sm:$0xff]
    %v1328 = vld [vmem:[#allocation8 + $0x6c8] sm:$0xff]
    %v1329 = vld [vmem:[#allocation8 + $0x6d0] sm:$0xff]
    %v1330 = vld [vmem:[#allocation8 + $0x6d8] sm:$0xff]
    %v1331 = vld [vmem:[#allocation8 + $0x6e0] sm:$0xff]
    %v1332 = vld [vmem:[#allocation8 + $0x6e8] sm:$0xff]
    %v1333 = vld [vmem:[#allocation8 + $0x6f0] sm:$0xff]
    %v1334 = vld [vmem:[#allocation8 + $0x6f8] sm:$0xff]
    %v1335 = vld [vmem:[#allocation8 + $0x700] sm:$0xff]
    %v1336 = vld [vmem:[#allocation8 + $0x708] sm:$0xff]
    %v1337 = vld [vmem:[#allocation8 + $0x710] sm:$0xff]
    %v1338 = vld [vmem:[#allocation8 + $0x718] sm:$0xff]
    %v1339 = vld [vmem:[#allocation8 + $0x720] sm:$0xff]
    %v1340 = vld [vmem:[#allocation8 + $0x728] sm:$0xff]
    %v1341 = vld [vmem:[#allocation8 + $0x730] sm:$0xff]
    %v1342 = vld [vmem:[#allocation8 + $0x738] sm:$0xff]
    %v1343 = vld [vmem:[#allocation8 + $0x740] sm:$0xff]
    %v1344 = vld [vmem:[#allocation8 + $0x748] sm:$0xff]
    %v1345 = vld [vmem:[#allocation8 + $0x750] sm:$0xff]
    %v1346 = vld [vmem:[#allocation8 + $0x758] sm:$0xff]
    %v1347 = vld [vmem:[#allocation8 + $0x760] sm:$0xff]
    %v1348 = vld [vmem:[#allocation8 + $0x768] sm:$0xff]
    %v1349 = vld [vmem:[#allocation8 + $0x770] sm:$0xff]
    %v1350 = vld [vmem:[#allocation8 + $0x778] sm:$0xff]
    %v1351 = vld [vmem:[#allocation8 + $0x780] sm:$0xff]
    %v1352 = vld [vmem:[#allocation8 + $0x788] sm:$0xff]
    %v1353 = vld [vmem:[#allocation8 + $0x790] sm:$0xff]
    %v1354 = vld [vmem:[#allocation8 + $0x798] sm:$0xff]
    %v1355 = vld [vmem:[#allocation8 + $0x7a0] sm:$0xff]
    %v1356 = vld [vmem:[#allocation8 + $0x7a8] sm:$0xff]
    %v1357 = vld [vmem:[#allocation8 + $0x7b0] sm:$0xff]
    %v1358 = vld [vmem:[#allocation8 + $0x7b8] sm:$0xff]
    %v1359 = vld [vmem:[#allocation8 + $0x7c0] sm:$0xff]
    %v1360 = vld [vmem:[#allocation8 + $0x7c8] sm:$0xff]
    %v1361 = vld [vmem:[#allocation8 + $0x7d0] sm:$0xff]
    %v1362 = vld [vmem:[#allocation8 + $0x7d8] sm:$0xff]
    %v1363 = vld [vmem:[#allocation8 + $0x7e0] sm:$0xff]
    %v1364 = vld [vmem:[#allocation8 + $0x7e8] sm:$0xff]
    %v1365 = vld [vmem:[#allocation8 + $0x7f0] sm:$0xff]
    %v1366 = vld [vmem:[#allocation8 + $0x7f8] sm:$0xff]
    %v1367 = vld [vmem:[#allocation10] sm:$0xf]
    %v1369 = vlaneseq
    %v1370 = vshrl.u32 %v1369, 7
    %v1371 = vsub.s32 0, %v1370
    %v1372 = vrot.slane %v1367, %v1371
    %v1373 = vlaneseq
    %v1374 = vshrl.u32 %v1373, 7
    %v1375 = vsub.s32 1, %v1374
    %v1376 = vrot.slane %v1367, %v1375
    %v1377 = vlaneseq
    %v1378 = vshrl.u32 %v1377, 7
    %v1379 = vsub.s32 2, %v1378
    %v1380 = vrot.slane %v1367, %v1379
    %v1381 = vlaneseq
    %v1382 = vshrl.u32 %v1381, 7
    %v1383 = vsub.s32 3, %v1382
    %v1384 = vrot.slane %v1367, %v1383
    %1389 = vmatprep.subr.mxu0 %v1112
    %1390 = vmatpush1.msra.mxu0 %v1111
    %1391 = vmatprep.subr.mxu0 %v1116
    %1392 = vmatpush1.msra.mxu0 %v1115
    %1393 = vmatprep.subr.mxu0 %v1120
    %1394 = vmatpush1.msra.mxu0 %v1119
    %1395 = vmatprep.subr.mxu0 %v1124
    %1396 = vmatpush1.msra.mxu0 %v1123
    %1397 = vmatprep.subr.mxu0 %v1128
    %1398 = vmatpush1.msra.mxu0 %v1127
    %1399 = vmatprep.subr.mxu0 %v1132
    %1400 = vmatpush1.msra.mxu0 %v1131
    %1401 = vmatprep.subr.mxu0 %v1136
    %1402 = vmatpush1.msra.mxu0 %v1135
    %1403 = vmatprep.subr.mxu0 %v1140
    %1404 = vmatpush1.msra.mxu0 %v1139
    %1405 = vmatprep.subr.mxu0 %v1144
    %1406 = vmatpush1.msra.mxu0 %v1143
    %1407 = vmatprep.subr.mxu0 %v1148
    %1408 = vmatpush1.msra.mxu0 %v1147
    %1409 = vmatprep.subr.mxu0 %v1152
    %1410 = vmatpush1.msra.mxu0 %v1151
    %1411 = vmatprep.subr.mxu0 %v1156
    %1412 = vmatpush1.msra.mxu0 %v1155
    %1413 = vmatprep.subr.mxu0 %v1160
    %1414 = vmatpush1.msra.mxu0 %v1159
    %1415 = vmatprep.subr.mxu0 %v1164
    %1416 = vmatpush1.msra.mxu0 %v1163
    %1417 = vmatprep.subr.mxu0 %v1168
    %1418 = vmatpush1.msra.mxu0 %v1167
    %1419 = vmatprep.subr.mxu0 %v1172
    %1420 = vmatpush1.msra.mxu0 %v1171
    %1421 = vmatprep.subr.mxu0 %v1176
    %1422 = vmatpush1.msra.mxu0 %v1175
    %1423 = vmatprep.subr.mxu0 %v1180
    %1424 = vmatpush1.msra.mxu0 %v1179
    %1425 = vmatprep.subr.mxu0 %v1184
    %1426 = vmatpush1.msra.mxu0 %v1183
    %1427 = vmatprep.subr.mxu0 %v1188
    %1428 = vmatpush1.msra.mxu0 %v1187
    %1429 = vmatprep.subr.mxu0 %v1192
    %1430 = vmatpush1.msra.mxu0 %v1191
    %1431 = vmatprep.subr.mxu0 %v1196
    %1432 = vmatpush1.msra.mxu0 %v1195
    %1433 = vmatprep.subr.mxu0 %v1200
    %1434 = vmatpush1.msra.mxu0 %v1199
    %1435 = vmatprep.subr.mxu0 %v1204
    %1436 = vmatpush1.msra.mxu0 %v1203
    %1437 = vmatprep.subr.mxu0 %v1208
    %1438 = vmatpush1.msra.mxu0 %v1207
    %1439 = vmatprep.subr.mxu0 %v1212
    %1440 = vmatpush1.msra.mxu0 %v1211
    %1441 = vmatprep.subr.mxu0 %v1216
    %1442 = vmatpush1.msra.mxu0 %v1215
    %1443 = vmatprep.subr.mxu0 %v1220
    %1444 = vmatpush1.msra.mxu0 %v1219
    %1445 = vmatprep.subr.mxu0 %v1224
    %1446 = vmatpush1.msra.mxu0 %v1223
    %1447 = vmatprep.subr.mxu0 %v1228
    %1448 = vmatpush1.msra.mxu0 %v1227
    %1449 = vmatprep.subr.mxu0 %v1232
    %1450 = vmatpush1.msra.mxu0 %v1231
    %1451 = vmatprep.subr.mxu0 %v1236
    %1452 = vmatpush1.msra.mxu0 %v1235
    %1453 = vmatprep.mubr.f32.mxu0 %v1108
    %1454 = vmatmul.mubr.f32.gmra.mrb[0].mxu0 %v1107
    %v1455 = vpop.f32.mrb[0].mxu0
    %v1456 = vadd.f32 %v1372, %v1455
    %v1457 = vpop.f32.mrb[0].mxu0
    %v1458 = vadd.f32 %v1376, %v1457
    %1459 = vdwg.mxu0
    %1460 = vmatprep.subr.mxu0 %v1240
    %1461 = vmatpush1.msra.mxu0 %v1239
    %1462 = vmatprep.subr.mxu0 %v1244
    %1463 = vmatpush1.msra.mxu0 %v1243
    %1464 = vmatprep.subr.mxu0 %v1248
    %1465 = vmatpush1.msra.mxu0 %v1247
    %1466 = vmatprep.subr.mxu0 %v1252
    %1467 = vmatpush1.msra.mxu0 %v1251
    %1468 = vmatprep.subr.mxu0 %v1256
    %1469 = vmatpush1.msra.mxu0 %v1255
    %1470 = vmatprep.subr.mxu0 %v1260
    %1471 = vmatpush1.msra.mxu0 %v1259
    %1472 = vmatprep.subr.mxu0 %v1264
    %1473 = vmatpush1.msra.mxu0 %v1263
    %1474 = vmatprep.subr.mxu0 %v1268
    %1475 = vmatpush1.msra.mxu0 %v1267
    %1476 = vmatprep.subr.mxu0 %v1272
    %1477 = vmatpush1.msra.mxu0 %v1271
    %1478 = vmatprep.subr.mxu0 %v1276
    %1479 = vmatpush1.msra.mxu0 %v1275
    %1480 = vmatprep.subr.mxu0 %v1280
    %1481 = vmatpush1.msra.mxu0 %v1279
    %1482 = vmatprep.subr.mxu0 %v1284
    %1483 = vmatpush1.msra.mxu0 %v1283
    %1484 = vmatprep.subr.mxu0 %v1288
    %1485 = vmatpush1.msra.mxu0 %v1287
    %1486 = vmatprep.subr.mxu0 %v1292
    %1487 = vmatpush1.msra.mxu0 %v1291
    %1488 = vmatprep.subr.mxu0 %v1296
    %1489 = vmatpush1.msra.mxu0 %v1295
    %1490 = vmatprep.subr.mxu0 %v1300
    %1491 = vmatpush1.msra.mxu0 %v1299
    %1492 = vmatprep.subr.mxu0 %v1304
    %1493 = vmatpush1.msra.mxu0 %v1303
    %1494 = vmatprep.subr.mxu0 %v1308
    %1495 = vmatpush1.msra.mxu0 %v1307
    %1496 = vmatprep.subr.mxu0 %v1312
    %1497 = vmatpush1.msra.mxu0 %v1311
    %1498 = vmatprep.subr.mxu0 %v1316
    %1499 = vmatpush1.msra.mxu0 %v1315
    %1500 = vmatprep.subr.mxu0 %v1320
    %1501 = vmatpush1.msra.mxu0 %v1319
    %1502 = vmatprep.subr.mxu0 %v1324
    %1503 = vmatpush1.msra.mxu0 %v1323
    %1504 = vmatprep.subr.mxu0 %v1328
    %1505 = vmatpush1.msra.mxu0 %v1327
    %1506 = vmatprep.subr.mxu0 %v1332
    %1507 = vmatpush1.msra.mxu0 %v1331
    %1508 = vmatprep.subr.mxu0 %v1336
    %1509 = vmatpush1.msra.mxu0 %v1335
    %1510 = vmatprep.subr.mxu0 %v1340
    %1511 = vmatpush1.msra.mxu0 %v1339
    %1512 = vmatprep.subr.mxu0 %v1344
    %1513 = vmatpush1.msra.mxu0 %v1343
    %1514 = vmatprep.subr.mxu0 %v1348
    %1515 = vmatpush1.msra.mxu0 %v1347
    %1516 = vmatprep.subr.mxu0 %v1352
    %1517 = vmatpush1.msra.mxu0 %v1351
    %1518 = vmatprep.subr.mxu0 %v1356
    %1519 = vmatpush1.msra.mxu0 %v1355
    %1520 = vmatprep.subr.mxu0 %v1360
    %1521 = vmatpush1.msra.mxu0 %v1359
    %1522 = vmatprep.subr.mxu0 %v1364
    %1523 = vmatpush1.msra.mxu0 %v1363
    %1524 = vmatprep.mubr.f32.mxu0 %v1110
    %1525 = vmatmul.mubr.f32.gmra.mrb[0].mxu0 %v1109
    %v1526 = vpop.f32.mrb[0].mxu0
    %v1527 = vadd.f32 %v1456, %v1526
    %v1528 = vpop.f32.mrb[0].mxu0
    %v1529 = vadd.f32 %v1458, %v1528
    %1530 = vdwg.mxu0
    %1531 = vmatprep.subr.mxu0 %v1114
    %1532 = vmatpush1.msra.mxu0 %v1113
    %1533 = vmatprep.subr.mxu0 %v1118
    %1534 = vmatpush1.msra.mxu0 %v1117
    %1535 = vmatprep.subr.mxu0 %v1122
    %1536 = vmatpush1.msra.mxu0 %v1121
    %1537 = vmatprep.subr.mxu0 %v1126
    %1538 = vmatpush1.msra.mxu0 %v1125
    %1539 = vmatprep.subr.mxu0 %v1130
    %1540 = vmatpush1.msra.mxu0 %v1129
    %1541 = vmatprep.subr.mxu0 %v1134
    %1542 = vmatpush1.msra.mxu0 %v1133
    %1543 = vmatprep.subr.mxu0 %v1138
    %1544 = vmatpush1.msra.mxu0 %v1137
    %1545 = vmatprep.subr.mxu0 %v1142
    %1546 = vmatpush1.msra.mxu0 %v1141
    %1547 = vmatprep.subr.mxu0 %v1146
    %1548 = vmatpush1.msra.mxu0 %v1145
    %1549 = vmatprep.subr.mxu0 %v1150
    %1550 = vmatpush1.msra.mxu0 %v1149
    %1551 = vmatprep.subr.mxu0 %v1154
    %1552 = vmatpush1.msra.mxu0 %v1153
    %1553 = vmatprep.subr.mxu0 %v1158
    %1554 = vmatpush1.msra.mxu0 %v1157
    %1555 = vmatprep.subr.mxu0 %v1162
    %1556 = vmatpush1.msra.mxu0 %v1161
    %1557 = vmatprep.subr.mxu0 %v1166
    %1558 = vmatpush1.msra.mxu0 %v1165
    %1559 = vmatprep.subr.mxu0 %v1170
    %1560 = vmatpush1.msra.mxu0 %v1169
    %1561 = vmatprep.subr.mxu0 %v1174
    %1562 = vmatpush1.msra.mxu0 %v1173
    %1563 = vmatprep.subr.mxu0 %v1178
    %1564 = vmatpush1.msra.mxu0 %v1177
    %1565 = vmatprep.subr.mxu0 %v1182
    %1566 = vmatpush1.msra.mxu0 %v1181
    %1567 = vmatprep.subr.mxu0 %v1186
    %1568 = vmatpush1.msra.mxu0 %v1185
    %1569 = vmatprep.subr.mxu0 %v1190
    %1570 = vmatpush1.msra.mxu0 %v1189
    %1571 = vmatprep.subr.mxu0 %v1194
    %1572 = vmatpush1.msra.mxu0 %v1193
    %1573 = vmatprep.subr.mxu0 %v1198
    %1574 = vmatpush1.msra.mxu0 %v1197
    %1575 = vmatprep.subr.mxu0 %v1202
    %1576 = vmatpush1.msra.mxu0 %v1201
    %1577 = vmatprep.subr.mxu0 %v1206
    %1578 = vmatpush1.msra.mxu0 %v1205
    %1579 = vmatprep.subr.mxu0 %v1210
    %1580 = vmatpush1.msra.mxu0 %v1209
    %1581 = vmatprep.subr.mxu0 %v1214
    %1582 = vmatpush1.msra.mxu0 %v1213
    %1583 = vmatprep.subr.mxu0 %v1218
    %1584 = vmatpush1.msra.mxu0 %v1217
    %1585 = vmatprep.subr.mxu0 %v1222
    %1586 = vmatpush1.msra.mxu0 %v1221
    %1587 = vmatprep.subr.mxu0 %v1226
    %1588 = vmatpush1.msra.mxu0 %v1225
    %1589 = vmatprep.subr.mxu0 %v1230
    %1590 = vmatpush1.msra.mxu0 %v1229
    %1591 = vmatprep.subr.mxu0 %v1234
    %1592 = vmatpush1.msra.mxu0 %v1233
    %1593 = vmatprep.subr.mxu0 %v1238
    %1594 = vmatpush1.msra.mxu0 %v1237
    %1595 = vmatprep.mubr.f32.mxu0 %v1108
    %1596 = vmatmul.mubr.f32.gmra.mrb[0].mxu0 %v1107
    %v1597 = vpop.f32.mrb[0].mxu0
    %v1598 = vadd.f32 %v1380, %v1597
    %v1599 = vpop.f32.mrb[0].mxu0
    %v1600 = vadd.f32 %v1384, %v1599
    %1601 = vdwg.mxu0
    %1602 = vmatprep.subr.mxu0 %v1242
    %1603 = vmatpush1.msra.mxu0 %v1241
    %1604 = vmatprep.subr.mxu0 %v1246
    %1605 = vmatpush1.msra.mxu0 %v1245
    %1606 = vmatprep.subr.mxu0 %v1250
    %1607 = vmatpush1.msra.mxu0 %v1249
    %1608 = vmatprep.subr.mxu0 %v1254
    %1609 = vmatpush1.msra.mxu0 %v1253
    %1610 = vmatprep.subr.mxu0 %v1258
    %1611 = vmatpush1.msra.mxu0 %v1257
    %1612 = vmatprep.subr.mxu0 %v1262
    %1613 = vmatpush1.msra.mxu0 %v1261
    %1614 = vmatprep.subr.mxu0 %v1266
    %1615 = vmatpush1.msra.mxu0 %v1265
    %1616 = vmatprep.subr.mxu0 %v1270
    %1617 = vmatpush1.msra.mxu0 %v1269
    %1618 = vmatprep.subr.mxu0 %v1274
    %1619 = vmatpush1.msra.mxu0 %v1273
    %1620 = vmatprep.subr.mxu0 %v1278
    %1621 = vmatpush1.msra.mxu0 %v1277
    %1622 = vmatprep.subr.mxu0 %v1282
    %1623 = vmatpush1.msra.mxu0 %v1281
    %1624 = vmatprep.subr.mxu0 %v1286
    %1625 = vmatpush1.msra.mxu0 %v1285
    %1626 = vmatprep.subr.mxu0 %v1290
    %1627 = vmatpush1.msra.mxu0 %v1289
    %1628 = vmatprep.subr.mxu0 %v1294
    %1629 = vmatpush1.msra.mxu0 %v1293
    %1630 = vmatprep.subr.mxu0 %v1298
    %1631 = vmatpush1.msra.mxu0 %v1297
    %1632 = vmatprep.subr.mxu0 %v1302
    %1633 = vmatpush1.msra.mxu0 %v1301
    %1634 = vmatprep.subr.mxu0 %v1306
    %1635 = vmatpush1.msra.mxu0 %v1305
    %1636 = vmatprep.subr.mxu0 %v1310
    %1637 = vmatpush1.msra.mxu0 %v1309
    %1638 = vmatprep.subr.mxu0 %v1314
    %1639 = vmatpush1.msra.mxu0 %v1313
    %1640 = vmatprep.subr.mxu0 %v1318
    %1641 = vmatpush1.msra.mxu0 %v1317
    %1642 = vmatprep.subr.mxu0 %v1322
    %1643 = vmatpush1.msra.mxu0 %v1321
    %1644 = vmatprep.subr.mxu0 %v1326
    %1645 = vmatpush1.msra.mxu0 %v1325
    %1646 = vmatprep.subr.mxu0 %v1330
    %1647 = vmatpush1.msra.mxu0 %v1329
    %1648 = vmatprep.subr.mxu0 %v1334
    %1649 = vmatpush1.msra.mxu0 %v1333
    %1650 = vmatprep.subr.mxu0 %v1338
    %1651 = vmatpush1.msra.mxu0 %v1337
    %1652 = vmatprep.subr.mxu0 %v1342
    %1653 = vmatpush1.msra.mxu0 %v1341
    %1654 = vmatprep.subr.mxu0 %v1346
    %1655 = vmatpush1.msra.mxu0 %v1345
    %1656 = vmatprep.subr.mxu0 %v1350
    %1657 = vmatpush1.msra.mxu0 %v1349
    %1658 = vmatprep.subr.mxu0 %v1354
    %1659 = vmatpush1.msra.mxu0 %v1353
    %1660 = vmatprep.subr.mxu0 %v1358
    %1661 = vmatpush1.msra.mxu0 %v1357
    %1662 = vmatprep.subr.mxu0 %v1362
    %1663 = vmatpush1.msra.mxu0 %v1361
    %1664 = vmatprep.subr.mxu0 %v1366
    %1665 = vmatpush1.msra.mxu0 %v1365
    %1666 = vmatprep.mubr.f32.mxu0 %v1110
    %1667 = vmatmul.mubr.f32.gmra.mrb[0].mxu0 %v1109
    %v1668 = vpop.f32.mrb[0].mxu0
    %v1669 = vadd.f32 %v1598, %v1668
    %v1670 = vpop.f32.mrb[0].mxu0
    %v1671 = vadd.f32 %v1600, %v1670
    %1672 = vdwg.mxu0
    %v1673 = vmax.f32 %v1527, 0.0
    %v1674 = vmax.f32 %v1529, 0.0
    %v1675 = vmax.f32 %v1669, 0.0
    %v1676 = vmax.f32 %v1671, 0.0
    %v1677 = vld [vmem:[#allocation11] sm:$0xff]
    %v1678 = vld [vmem:[#allocation11 + $0x8] sm:$0xff]
    %v1679 = vld [vmem:[#allocation11 + $0x10] sm:$0xff]
    %v1680 = vld [vmem:[#allocation11 + $0x18] sm:$0xff]
    %v1681 = vld [vmem:[#allocation11 + $0x20] sm:$0xff]
    %v1682 = vld [vmem:[#allocation11 + $0x28] sm:$0xff]
    %v1683 = vld [vmem:[#allocation11 + $0x30] sm:$0xff]
    %v1684 = vld [vmem:[#allocation11 + $0x38] sm:$0xff]
    %v1685 = vld [vmem:[#allocation11 + $0x40] sm:$0xff]
    %v1686 = vld [vmem:[#allocation11 + $0x48] sm:$0xff]
    %v1687 = vld [vmem:[#allocation11 + $0x50] sm:$0xff]
    %v1688 = vld [vmem:[#allocation11 + $0x58] sm:$0xff]
    %v1689 = vld [vmem:[#allocation11 + $0x60] sm:$0xff]
    %v1690 = vld [vmem:[#allocation11 + $0x68] sm:$0xff]
    %v1691 = vld [vmem:[#allocation11 + $0x70] sm:$0xff]
    %v1692 = vld [vmem:[#allocation11 + $0x78] sm:$0xff]
    %v1693 = vld [vmem:[#allocation11 + $0x80] sm:$0xff]
    %v1694 = vld [vmem:[#allocation11 + $0x88] sm:$0xff]
    %v1695 = vld [vmem:[#allocation11 + $0x90] sm:$0xff]
    %v1696 = vld [vmem:[#allocation11 + $0x98] sm:$0xff]
    %v1697 = vld [vmem:[#allocation11 + $0xa0] sm:$0xff]
    %v1698 = vld [vmem:[#allocation11 + $0xa8] sm:$0xff]
    %v1699 = vld [vmem:[#allocation11 + $0xb0] sm:$0xff]
    %v1700 = vld [vmem:[#allocation11 + $0xb8] sm:$0xff]
    %v1701 = vld [vmem:[#allocation11 + $0xc0] sm:$0xff]
    %v1702 = vld [vmem:[#allocation11 + $0xc8] sm:$0xff]
    %v1703 = vld [vmem:[#allocation11 + $0xd0] sm:$0xff]
    %v1704 = vld [vmem:[#allocation11 + $0xd8] sm:$0xff]
    %v1705 = vld [vmem:[#allocation11 + $0xe0] sm:$0xff]
    %v1706 = vld [vmem:[#allocation11 + $0xe8] sm:$0xff]
    %v1707 = vld [vmem:[#allocation11 + $0xf0] sm:$0xff]
    %v1708 = vld [vmem:[#allocation11 + $0xf8] sm:$0xff]
    %v1709 = vld [vmem:[#allocation11 + $0x100] sm:$0xff]
    %v1710 = vld [vmem:[#allocation11 + $0x108] sm:$0xff]
    %v1711 = vld [vmem:[#allocation11 + $0x110] sm:$0xff]
    %v1712 = vld [vmem:[#allocation11 + $0x118] sm:$0xff]
    %v1713 = vld [vmem:[#allocation11 + $0x120] sm:$0xff]
    %v1714 = vld [vmem:[#allocation11 + $0x128] sm:$0xff]
    %v1715 = vld [vmem:[#allocation11 + $0x130] sm:$0xff]
    %v1716 = vld [vmem:[#allocation11 + $0x138] sm:$0xff]
    %v1717 = vld [vmem:[#allocation11 + $0x140] sm:$0xff]
    %v1718 = vld [vmem:[#allocation11 + $0x148] sm:$0xff]
    %v1719 = vld [vmem:[#allocation11 + $0x150] sm:$0xff]
    %v1720 = vld [vmem:[#allocation11 + $0x158] sm:$0xff]
    %v1721 = vld [vmem:[#allocation11 + $0x160] sm:$0xff]
    %v1722 = vld [vmem:[#allocation11 + $0x168] sm:$0xff]
    %v1723 = vld [vmem:[#allocation11 + $0x170] sm:$0xff]
    %v1724 = vld [vmem:[#allocation11 + $0x178] sm:$0xff]
    %v1725 = vld [vmem:[#allocation11 + $0x180] sm:$0xff]
    %v1726 = vld [vmem:[#allocation11 + $0x188] sm:$0xff]
    %v1727 = vld [vmem:[#allocation11 + $0x190] sm:$0xff]
    %v1728 = vld [vmem:[#allocation11 + $0x198] sm:$0xff]
    %v1729 = vld [vmem:[#allocation11 + $0x1a0] sm:$0xff]
    %v1730 = vld [vmem:[#allocation11 + $0x1a8] sm:$0xff]
    %v1731 = vld [vmem:[#allocation11 + $0x1b0] sm:$0xff]
    %v1732 = vld [vmem:[#allocation11 + $0x1b8] sm:$0xff]
    %v1733 = vld [vmem:[#allocation11 + $0x1c0] sm:$0xff]
    %v1734 = vld [vmem:[#allocation11 + $0x1c8] sm:$0xff]
    %v1735 = vld [vmem:[#allocation11 + $0x1d0] sm:$0xff]
    %v1736 = vld [vmem:[#allocation11 + $0x1d8] sm:$0xff]
    %v1737 = vld [vmem:[#allocation11 + $0x1e0] sm:$0xff]
    %v1738 = vld [vmem:[#allocation11 + $0x1e8] sm:$0xff]
    %v1739 = vld [vmem:[#allocation11 + $0x1f0] sm:$0xff]
    %v1740 = vld [vmem:[#allocation11 + $0x1f8] sm:$0xff]
    %v1741 = vld [vmem:[#allocation13] sm:$0x1]
    %v1743 = vlaneseq
    %v1744 = vshrl.u32 %v1743, 7
    %v1745 = vsub.s32 0, %v1744
    %v1746 = vrot.slane %v1741, %v1745
    %1748 = vmatprep.subr.mxu0 0.0
    %1749 = vmatpush1.msra.mxu0 %v1677
    %1750 = vmatprep.subr.mxu0 0.0
    %1751 = vmatpush1.msra.mxu0 %v1678
    %1752 = vmatprep.subr.mxu0 0.0
    %1753 = vmatpush1.msra.mxu0 %v1679
    %1754 = vmatprep.subr.mxu0 0.0
    %1755 = vmatpush1.msra.mxu0 %v1680
    %1756 = vmatprep.subr.mxu0 0.0
    %1757 = vmatpush1.msra.mxu0 %v1681
    %1758 = vmatprep.subr.mxu0 0.0
    %1759 = vmatpush1.msra.mxu0 %v1682
    %1760 = vmatprep.subr.mxu0 0.0
    %1761 = vmatpush1.msra.mxu0 %v1683
    %1762 = vmatprep.subr.mxu0 0.0
    %1763 = vmatpush1.msra.mxu0 %v1684
    %1764 = vmatprep.subr.mxu0 0.0
    %1765 = vmatpush1.msra.mxu0 %v1685
    %1766 = vmatprep.subr.mxu0 0.0
    %1767 = vmatpush1.msra.mxu0 %v1686
    %1768 = vmatprep.subr.mxu0 0.0
    %1769 = vmatpush1.msra.mxu0 %v1687
    %1770 = vmatprep.subr.mxu0 0.0
    %1771 = vmatpush1.msra.mxu0 %v1688
    %1772 = vmatprep.subr.mxu0 0.0
    %1773 = vmatpush1.msra.mxu0 %v1689
    %1774 = vmatprep.subr.mxu0 0.0
    %1775 = vmatpush1.msra.mxu0 %v1690
    %1776 = vmatprep.subr.mxu0 0.0
    %1777 = vmatpush1.msra.mxu0 %v1691
    %1778 = vmatprep.subr.mxu0 0.0
    %1779 = vmatpush1.msra.mxu0 %v1692
    %1780 = vmatprep.subr.mxu0 0.0
    %1781 = vmatpush1.msra.mxu0 %v1693
    %1782 = vmatprep.subr.mxu0 0.0
    %1783 = vmatpush1.msra.mxu0 %v1694
    %1784 = vmatprep.subr.mxu0 0.0
    %1785 = vmatpush1.msra.mxu0 %v1695
    %1786 = vmatprep.subr.mxu0 0.0
    %1787 = vmatpush1.msra.mxu0 %v1696
    %1788 = vmatprep.subr.mxu0 0.0
    %1789 = vmatpush1.msra.mxu0 %v1697
    %1790 = vmatprep.subr.mxu0 0.0
    %1791 = vmatpush1.msra.mxu0 %v1698
    %1792 = vmatprep.subr.mxu0 0.0
    %1793 = vmatpush1.msra.mxu0 %v1699
    %1794 = vmatprep.subr.mxu0 0.0
    %1795 = vmatpush1.msra.mxu0 %v1700
    %1796 = vmatprep.subr.mxu0 0.0
    %1797 = vmatpush1.msra.mxu0 %v1701
    %1798 = vmatprep.subr.mxu0 0.0
    %1799 = vmatpush1.msra.mxu0 %v1702
    %1800 = vmatprep.subr.mxu0 0.0
    %1801 = vmatpush1.msra.mxu0 %v1703
    %1802 = vmatprep.subr.mxu0 0.0
    %1803 = vmatpush1.msra.mxu0 %v1704
    %1804 = vmatprep.subr.mxu0 0.0
    %1805 = vmatpush1.msra.mxu0 %v1705
    %1806 = vmatprep.subr.mxu0 0.0
    %1807 = vmatpush1.msra.mxu0 %v1706
    %1808 = vmatprep.subr.mxu0 0.0
    %1809 = vmatpush1.msra.mxu0 %v1707
    %1810 = vmatprep.subr.mxu0 0.0
    %1811 = vmatpush1.msra.mxu0 %v1708
    %1812 = vmatprep.mubr.f32.mxu0 %v1674
    %1813 = vmatmul.mubr.f32.gmra.mrb[0].mxu0 %v1673
    %v1814 = vpop.f32.mrb[0].mxu0
    %v1815 = vadd.f32 %v1746, %v1814
    %v1816 = vpop.f32.mrb[0].mxu0
    %1817 = vdwg.mxu0
    %1818 = vmatprep.subr.mxu0 0.0
    %1819 = vmatpush1.msra.mxu0 %v1709
    %1820 = vmatprep.subr.mxu0 0.0
    %1821 = vmatpush1.msra.mxu0 %v1710
    %1822 = vmatprep.subr.mxu0 0.0
    %1823 = vmatpush1.msra.mxu0 %v1711
    %1824 = vmatprep.subr.mxu0 0.0
    %1825 = vmatpush1.msra.mxu0 %v1712
    %1826 = vmatprep.subr.mxu0 0.0
    %1827 = vmatpush1.msra.mxu0 %v1713
    %1828 = vmatprep.subr.mxu0 0.0
    %1829 = vmatpush1.msra.mxu0 %v1714
    %1830 = vmatprep.subr.mxu0 0.0
    %1831 = vmatpush1.msra.mxu0 %v1715
    %1832 = vmatprep.subr.mxu0 0.0
    %1833 = vmatpush1.msra.mxu0 %v1716
    %1834 = vmatprep.subr.mxu0 0.0
    %1835 = vmatpush1.msra.mxu0 %v1717
    %1836 = vmatprep.subr.mxu0 0.0
    %1837 = vmatpush1.msra.mxu0 %v1718
    %1838 = vmatprep.subr.mxu0 0.0
    %1839 = vmatpush1.msra.mxu0 %v1719
    %1840 = vmatprep.subr.mxu0 0.0
    %1841 = vmatpush1.msra.mxu0 %v1720
    %1842 = vmatprep.subr.mxu0 0.0
    %1843 = vmatpush1.msra.mxu0 %v1721
    %1844 = vmatprep.subr.mxu0 0.0
    %1845 = vmatpush1.msra.mxu0 %v1722
    %1846 = vmatprep.subr.mxu0 0.0
    %1847 = vmatpush1.msra.mxu0 %v1723
    %1848 = vmatprep.subr.mxu0 0.0
    %1849 = vmatpush1.msra.mxu0 %v1724
    %1850 = vmatprep.subr.mxu0 0.0
    %1851 = vmatpush1.msra.mxu0 %v1725
    %1852 = vmatprep.subr.mxu0 0.0
    %1853 = vmatpush1.msra.mxu0 %v1726
    %1854 = vmatprep.subr.mxu0 0.0
    %1855 = vmatpush1.msra.mxu0 %v1727
    %1856 = vmatprep.subr.mxu0 0.0
    %1857 = vmatpush1.msra.mxu0 %v1728
    %1858 = vmatprep.subr.mxu0 0.0
    %1859 = vmatpush1.msra.mxu0 %v1729
    %1860 = vmatprep.subr.mxu0 0.0
    %1861 = vmatpush1.msra.mxu0 %v1730
    %1862 = vmatprep.subr.mxu0 0.0
    %1863 = vmatpush1.msra.mxu0 %v1731
    %1864 = vmatprep.subr.mxu0 0.0
    %1865 = vmatpush1.msra.mxu0 %v1732
    %1866 = vmatprep.subr.mxu0 0.0
    %1867 = vmatpush1.msra.mxu0 %v1733
    %1868 = vmatprep.subr.mxu0 0.0
    %1869 = vmatpush1.msra.mxu0 %v1734
    %1870 = vmatprep.subr.mxu0 0.0
    %1871 = vmatpush1.msra.mxu0 %v1735
    %1872 = vmatprep.subr.mxu0 0.0
    %1873 = vmatpush1.msra.mxu0 %v1736
    %1874 = vmatprep.subr.mxu0 0.0
    %1875 = vmatpush1.msra.mxu0 %v1737
    %1876 = vmatprep.subr.mxu0 0.0
    %1877 = vmatpush1.msra.mxu0 %v1738
    %1878 = vmatprep.subr.mxu0 0.0
    %1879 = vmatpush1.msra.mxu0 %v1739
    %1880 = vmatprep.subr.mxu0 0.0
    %1881 = vmatpush1.msra.mxu0 %v1740
    %1882 = vmatprep.mubr.f32.mxu0 %v1676
    %1883 = vmatmul.mubr.f32.gmra.mrb[0].mxu0 %v1675
    %v1884 = vpop.f32.mrb[0].mxu0
    %v1885 = vadd.f32 %v1815, %v1884
    %v1886 = vpop.f32.mrb[0].mxu0
    %1887 = vdwg.mxu0
    %v1888 = vmax.f32 %v1885, 0.0
    %1889 = vst [vmem:[#allocation14] sm:$0xff] %v1888
    // Predicated region
    $region58: #{tpu_custom_call.1} parent=1 // pred_check
      _
    $region59: #{tpu_custom_call.1} parent=1 // pred_check_branch
      %1891 = sbr.rel (0) target = $region61
    $region60: #{tpu_custom_call.1} parent=1 // pred_region
      %s1893 = ssub.s32 128, 128
      %1894 = vsyncadd [#allocation4], %s1893
      %s1896 = sshll.u32 [#allocation14], 4
      %s1897 = int_to_ptr.vmem [resolvable:$true] %s1896
      %1899 = dma.vmem_to_hbm [thread:$0]  %s1897, 128, %s7, [#allocation4]
    $region61: #{tpu_custom_call.1} parent=1 // pred_fallthru
      _
    // Predicated region
    $region62: #{tpu_custom_call.1} parent=1 // pred_check
      _
    $region63: #{tpu_custom_call.1} parent=1 // pred_check_branch
      %1901 = sbr.rel (0) target = $region65
    $region64: #{tpu_custom_call.1} parent=1 // pred_region
      %1902 = dma.done [#allocation4], 128
    $region65: #{tpu_custom_call.1} parent=1 // pred_fallthru
      _
    %1903 = vsyncpa [#allocation3], 1
    %1904 = vsyncpa [#allocation6], 1
    %1905 = vsyncpa [#allocation9], 1
    %1906 = vsyncpa [#allocation12], 1
    %1907 = vsyncpa [#allocation4], 1

</llo_original>
